<compile_context>
chip_gen: v7x
topology: tpu7x:2x2x1
jax: 0.10.0
libtpu: 0.0.40
codegen_flags: <defaults>
</compile_context>

<pallas_src>
import jax
import jax.numpy as jnp
from jax.experimental import pallas as pl
from jax.experimental.pallas import tpu as pltpu


_MIB = 1024 * 1024
_TILE_BYTES = 2 * _MIB  # target bytes of one (C, ts) f32 activation tile


# --------------------------------------------------------------------------- #
# Tiling / VMEM helpers
# --------------------------------------------------------------------------- #
def _choose_spatial_tile(S, C, tile_bytes=_TILE_BYTES):
    """Byte-budgeted spatial tile: largest multiple-of-128 divisor of S with
    4*C*ts <= tile_bytes.  Falls back to the full extent (always a legal
    BlockSpec since the block dim equals the array dim)."""
    cap = (tile_bytes // (4 * max(C, 1))) // 128 * 128
    cap = max(cap, 128)
    if S <= cap:
        return S
    best = None
    for t in range(128, cap + 1, 128):
        if S % t == 0:
            best = t
    if best is not None:
        return best
    # TODO(synk): S has no multiple-of-128 divisor under the byte budget; fall
    # back to a full-extent spatial block (legal, but may over-commit VMEM for
    # very large oddly-shaped S).  A masked partial-tile path would remove this.
    return S


def _vmem_limit_bytes(n_streamed, C, ts, param_bytes):
    """n_streamed double-buffered (C, ts) f32 tiles + resident params, with
    headroom.  Clamped to [32 MiB, 64 MiB] (<= physical on v5e/v6e/v7x)."""
    est = n_streamed * 2 * 4 * C * ts + param_bytes
    return int(min(64 * _MIB, max(32 * _MIB, 2 * est)))


# --------------------------------------------------------------------------- #
# Kernel 1: fused generator + pool(x) + pool(a) + both stacked head sets
#           (training_dis=False branch: a single pallas_call)
# --------------------------------------------------------------------------- #
def _make_gen_heads_kernel(inv_s, use_bf16):
    def kernel(x_ref, gw_ref, gb_ref,
               w1t_ref, b1t_ref, w2t_ref, b2t_ref,          # heads on pooled(x)
               w1pt_ref, b1pt_ref, w2pt_ref, b2pt_ref,      # heads_xp on pooled(a)
               a_ref, lx_ref, fx_ref, la_ref, fa_ref,       # outputs
               px_acc, pa_acc):                             # per-batch scratch
        i = pl.program_id(1)

        # --- generator: 1x1 conv as channels-first matmul (MXU) + tanh (EUP) ---
        x = x_ref[...]                                                # [C, ts]
        if use_bf16:
            y = jnp.dot(gw_ref[...].astype(jnp.bfloat16),
                        x.astype(jnp.bfloat16),
                        preferred_element_type=jnp.float32)
        else:
            y = jnp.dot(gw_ref[...], x, preferred_element_type=jnp.float32)
        a = jnp.tanh(y + gb_ref[...])                                 # [C, ts]
        a_ref[...] = a                                                # lane-dense store

        # --- fused global-average-pool partials (resident per-batch scratch) ---
        @pl.when(i == 0)
        def _init():
            px_acc[...] = jnp.zeros_like(px_acc)
            pa_acc[...] = jnp.zeros_like(pa_acc)

        px_acc[...] += jnp.sum(x, axis=1, keepdims=True)              # [C, 1]
        pa_acc[...] += jnp.sum(a, axis=1, keepdims=True)              # [C, 1]

        # --- head epilogue: tiny GEMMs fused at the last spatial tile ---
        @pl.when(i == pl.num_programs(1) - 1)
        def _heads():
            px = px_acc[...] * inv_s                                  # pooled(x) [C,1]
            pa = pa_acc[...] * inv_s                                  # pooled(a) [C,1]
            fx = jnp.maximum(
                jnp.dot(w1t_ref[...], px, preferred_element_type=jnp.float32)
                + b1t_ref[...], 0.0)                                  # [Hc, 1]
            lx = (jnp.dot(w2t_ref[...], fx, preferred_element_type=jnp.float32)
                  + b2t_ref[...])                                     # [Nc, 1]
            fa = jnp.maximum(
                jnp.dot(w1pt_ref[...], pa, preferred_element_type=jnp.float32)
                + b1pt_ref[...], 0.0)
            la = (jnp.dot(w2pt_ref[...], fa, preferred_element_type=jnp.float32)
                  + b2pt_ref[...])
            fx_ref[...] = fx
            lx_ref[...] = lx
            fa_ref[...] = fa
            la_ref[...] = la

    return kernel


def gen_heads_forward(x_cs, gen_params, stackedT, stackedT_xp, ts):
    """x_cs: [B, C, S] channels-first.  Returns (a_cs, logits_x, feat_x,
    logits_a, feat_a) with head outputs column-oriented [B, n, 1]."""
    B, C, S = x_cs.shape
    gw, gb = gen_params
    W1T, B1T, W2T, B2T = stackedT
    W1pT, B1pT, W2pT, B2pT = stackedT_xp
    Hc, Nc = W1T.shape[0], W2T.shape[0]
    n_tiles = S // ts
    use_bf16 = C >= 256   # bf16 MXU inputs only once the conv matters; re-check tol if enabled
    kernel = _make_gen_heads_kernel(1.0 / float(S), use_bf16)

    def res2(shp):
        return pl.BlockSpec(shp, lambda b, i: (0, 0))

    def col_spec(n):
        return pl.BlockSpec((None, n, 1), lambda b, i: (b, 0, 0))

    x_spec = pl.BlockSpec((None, C, ts), lambda b, i: (b, 0, i))
    a_spec = pl.BlockSpec((None, C, ts), lambda b, i: (b, 0, i))

    param_bytes = 4 * (C * C + C + 2 * (Hc * C + Hc + Nc * Hc + Nc))
    flops = 2 * B * S * C * C + 4 * B * S * C + 4 * B * (C * Hc + Hc * Nc)
    bytes_accessed = 4 * (2 * B * C * S) + param_bytes + 4 * 2 * B * (Hc + Nc)

    a, lx, fx, la, fa = pl.pallas_call(
        kernel,
        grid=(B, n_tiles),
        in_specs=[
            x_spec,
            res2((C, C)), res2((C, 1)),
            res2((Hc, C)), res2((Hc, 1)), res2((Nc, Hc)), res2((Nc, 1)),
            res2((Hc, C)), res2((Hc, 1)), res2((Nc, Hc)), res2((Nc, 1)),
        ],
        out_specs=(a_spec, col_spec(Nc), col_spec(Hc), col_spec(Nc), col_spec(Hc)),
        out_shape=(
            jax.ShapeDtypeStruct((B, C, S), jnp.float32),
            jax.ShapeDtypeStruct((B, Nc, 1), jnp.float32),
            jax.ShapeDtypeStruct((B, Hc, 1), jnp.float32),
            jax.ShapeDtypeStruct((B, Nc, 1), jnp.float32),
            jax.ShapeDtypeStruct((B, Hc, 1), jnp.float32),
        ),
        scratch_shapes=[pltpu.VMEM((C, 1), jnp.float32),
                        pltpu.VMEM((C, 1), jnp.float32)],
        compiler_params=pltpu.CompilerParams(
            dimension_semantics=("parallel", "arbitrary"),
            vmem_limit_bytes=_vmem_limit_bytes(2, C, ts, param_bytes)),
        cost_estimate=pl.CostEstimate(
            flops=flops, transcendentals=B * S * C, bytes_accessed=bytes_accessed),
    )(x_cs, gw, gb, W1T, B1T, W2T, B2T, W1pT, B1pT, W2pT, B2pT)
    return a, lx, fx, la, fa


# --------------------------------------------------------------------------- #
# Kernel 2: pool + one stacked head set (training_dis=True / run_discriminators*)
# --------------------------------------------------------------------------- #
def _make_pool_heads_kernel(inv_s):
    def kernel(x_ref, w1t_ref, b1t_ref, w2t_ref, b2t_ref, l_ref, f_ref, p_acc):
        i = pl.program_id(1)

        @pl.when(i == 0)
        def _init():
            p_acc[...] = jnp.zeros_like(p_acc)

        p_acc[...] += jnp.sum(x_ref[...], axis=1, keepdims=True)      # [C, 1]

        @pl.when(i == pl.num_programs(1) - 1)
        def _heads():
            p = p_acc[...] * inv_s
            f = jnp.maximum(
                jnp.dot(w1t_ref[...], p, preferred_element_type=jnp.float32)
                + b1t_ref[...], 0.0)
            l = (jnp.dot(w2t_ref[...], f, preferred_element_type=jnp.float32)
                 + b2t_ref[...])
            f_ref[...] = f
            l_ref[...] = l

    return kernel


def pool_heads_forward(x_cs, stackedT, ts):
    B, C, S = x_cs.shape
    W1T, B1T, W2T, B2T = stackedT
    Hc, Nc = W1T.shape[0], W2T.shape[0]
    n_tiles = S // ts
    kernel = _make_pool_heads_kernel(1.0 / float(S))

    def res2(shp):
        return pl.BlockSpec(shp, lambda b, i: (0, 0))

    param_bytes = 4 * (Hc * C + Hc + Nc * Hc + Nc)
    l, f = pl.pallas_call(
        kernel,
        grid=(B, n_tiles),
        in_specs=[
            pl.BlockSpec((None, C, ts), lambda b, i: (b, 0, i)),
            res2((Hc, C)), res2((Hc, 1)), res2((Nc, Hc)), res2((Nc, 1)),
        ],
        out_specs=(pl.BlockSpec((None, Nc, 1), lambda b, i: (b, 0, 0)),
                   pl.BlockSpec((None, Hc, 1), lambda b, i: (b, 0, 0))),
        out_shape=(jax.ShapeDtypeStruct((B, Nc, 1), jnp.float32),
                   jax.ShapeDtypeStruct((B, Hc, 1), jnp.float32)),
        scratch_shapes=[pltpu.VMEM((C, 1), jnp.float32)],
        compiler_params=pltpu.CompilerParams(
            dimension_semantics=("parallel", "arbitrary"),
            vmem_limit_bytes=_vmem_limit_bytes(1, C, ts, param_bytes)),
        cost_estimate=pl.CostEstimate(
            flops=2 * B * S * C + 2 * B * (C * Hc + Hc * Nc),
            transcendentals=0,
            bytes_accessed=4 * B * C * S + param_bytes + 4 * B * (Hc + Nc)),
    )(x_cs, W1T, B1T, W2T, B2T)
    return l, f


# --------------------------------------------------------------------------- #
# Kernel 3: generator only (standalone anonymize())
# --------------------------------------------------------------------------- #
def _make_gen_kernel(use_bf16):
    def kernel(x_ref, gw_ref, gb_ref, a_ref):
        x = x_ref[...]
        if use_bf16:
            y = jnp.dot(gw_ref[...].astype(jnp.bfloat16), x.astype(jnp.bfloat16),
                        preferred_element_type=jnp.float32)
        else:
            y = jnp.dot(gw_ref[...], x, preferred_element_type=jnp.float32)
        a_ref[...] = jnp.tanh(y + gb_ref[...])
    return kernel


def gen_forward(x_cs, gen_params, ts):
    B, C, S = x_cs.shape
    gw, gb = gen_params
    n_tiles = S // ts
    kernel = _make_gen_kernel(C >= 256)
    return pl.pallas_call(
        kernel,
        grid=(B, n_tiles),
        in_specs=[pl.BlockSpec((None, C, ts), lambda b, i: (b, 0, i)),
                  pl.BlockSpec((C, C), lambda b, i: (0, 0)),
                  pl.BlockSpec((C, 1), lambda b, i: (0, 0))],
        out_specs=pl.BlockSpec((None, C, ts), lambda b, i: (b, 0, i)),
        out_shape=jax.ShapeDtypeStruct((B, C, S), jnp.float32),
        compiler_params=pltpu.CompilerParams(
            dimension_semantics=("parallel", "parallel"),
            vmem_limit_bytes=_vmem_limit_bytes(2, C, ts, 4 * (C * C + C))),
        cost_estimate=pl.CostEstimate(
            flops=2 * B * S * C * C, transcendentals=B * S * C,
            bytes_accessed=4 * (2 * B * C * S + C * C + C)),
    )(x_cs, gw, gb)


# --------------------------------------------------------------------------- #
# Head stacking (column-oriented: all heads of one param set in one GEMM pair)
# --------------------------------------------------------------------------- #
def _stack_heads_T(disc_params):
    """W1T = [nd*HID, C], b1T = [nd*HID, 1], W2T = block_diag(w2.T) [nd*NCLS, nd*HID],
    b2T = [nd*NCLS, 1].  Numerically identical to running each head separately."""
    names = tuple(disc_params.keys())
    w1s = [disc_params[n][0] for n in names]   # [C, HID]
    b1s = [disc_params[n][1] for n in names]   # [1, HID]
    w2s = [disc_params[n][2] for n in names]   # [HID, NCLS]
    b2s = [disc_params[n][3] for n in names]   # [1, NCLS]
    hid = w1s[0].shape[1]
    ncls = w2s[0].shape[1]
    W1T = jnp.concatenate([w.T for w in w1s], axis=0)
    B1T = jnp.concatenate([b.reshape(-1, 1) for b in b1s], axis=0)
    W2T = jax.scipy.linalg.block_diag(*[w.T for w in w2s])
    B2T = jnp.concatenate([b.reshape(-1, 1) for b in b2s], axis=0)
    return names, (W1T, B1T, W2T, B2T), hid, ncls


# --------------------------------------------------------------------------- #
# Trainer glue
# --------------------------------------------------------------------------- #
class Trainer:
    def __init__(self, gen_params, disc_params):
        self.gen_params = gen_params            # (W [C_out, C_in], b [C_out, 1])
        self.disc_params = disc_params
        # discriminators_xp: deep copy of every discriminator except 'infonce',
        # which is shared (same parameter arrays), as in the PyTorch reference.
        self.disc_params_xp = {
            attr: (p if attr == "infonce" else jax.tree_util.tree_map(jnp.copy, p))
            for attr, p in disc_params.items()
        }
        # NOTE: the stacked arrays are derived, forward-only views; parameter
        # sharing ('infonce') is defined at the disc_params dict level — a
        # training step must update those dicts and call _restack().
        self._restack()
        # TODO(synk): freeze/unfreeze & train/eval-mode bookkeeping affects only
        # autograd / BN-dropout behaviour in PyTorch; no forward-pass effect here.

    def _restack(self):
        self._names, self._stackedT, self._hid, self._ncls = _stack_heads_T(self.disc_params)
        _, self._stackedT_xp, _, _ = _stack_heads_T(self.disc_params_xp)

    def _split_heads(self, logits_col, feat_col):
        outs, outs_feat = {}, {}
        for k, name in enumerate(self._names):
            outs[name] = logits_col[:, k * self._ncls:(k + 1) * self._ncls, 0]
            outs_feat[name] = feat_col[:, k * self._hid:(k + 1) * self._hid, 0]
        return outs, outs_feat

    # ---- reference-API methods ------------------------------------------- #
    def anonymize(self, x):
        B, C, H, W = x.shape
        S = H * W
        a_cs = gen_forward(x.reshape(B, C, S), self.gen_params,
                           _choose_spatial_tile(S, C))
        return a_cs.reshape(B, C, H, W)

    def _run(self, x, stackedT):
        B, C, H, W = x.shape
        S = H * W
        l, f = pool_heads_forward(x.reshape(B, C, S), stackedT,
                                  _choose_spatial_tile(S, C))
        outs, outs_feat = self._split_heads(l, f)
        return x, outs, outs_feat

    def run_discriminators(self, x):
        return self._run(x, self._stackedT)

    def run_discriminators_xp(self, x):
        return self._run(x, self._stackedT_xp)

    # ---- forward ---------------------------------------------------------- #
    def forward(self, x, training_dis):
        B, C, H, W = x.shape
        S = H * W
        x_cs = x.reshape(B, C, S)      # channels-first; pure reshape (no transpose / HBM pass)
        ts = _choose_spatial_tile(S, C)

        if not training_dis:
            # One fused pallas_call: read x once, write `a` once, pool x and a
            # on the fly, and run both stacked head sets in the epilogue.
            a_cs, lx, fx, la, fa = gen_heads_forward(
                x_cs, self.gen_params, self._stackedT, self._stackedT_xp, ts)
            anonymized_x = a_cs.reshape(B, C, H, W)     # free reshape back to NCHW
            outs, outs_feat = self._split_heads(lx, fx)
            outsp, outs_featp = self._split_heads(la, fa)
            return (anonymized_x, outs, outs_feat, None, None, outsp, outs_featp)
        else:
            l, f = pool_heads_forward(x_cs, self._stackedT_xp, ts)
            outsp, outs_featp = self._split_heads(l, f)
            return (outsp, outs_featp)

    __call__ = forward


# --------------------------------------------------------------------------- #
# Parameter setup
# --------------------------------------------------------------------------- #
def make_params(key, C, HID, NCLS, disc_names):
    ks = jax.random.split(key, 2 + 4 * len(disc_names))
    gw = jax.random.normal(ks[0], (C, C), jnp.float32) * 0.2      # [C_out, C_in]
    gb = jax.random.normal(ks[1], (C, 1), jnp.float32) * 0.1      # [C_out, 1]
    gen_params = (gw, gb)

    disc_params = {}
    for i, name in enumerate(disc_names):
        k1, k2, k3, k4 = ks[2 + 4 * i: 6 + 4 * i]
        w1 = jax.random.normal(k1, (C, HID), jnp.float32) * 0.2
        b1 = jax.random.normal(k2, (1, HID), jnp.float32) * 0.1
        w2 = jax.random.normal(k3, (HID, NCLS), jnp.float32) * 0.2
        b2 = jax.random.normal(k4, (1, NCLS), jnp.float32) * 0.1
        disc_params[name] = (w1, b1, w2, b2)
    return gen_params, disc_params


if __name__ == "__main__":
    B, C, H, W = 2, 4, 16, 16
    HID, NCLS = 32, 8
    disc_names = ("speaker", "infonce")

    key = jax.random.PRNGKey(0)
    kx, kp = jax.random.split(key)
    x = jax.random.normal(kx, (B, C, H, W), jnp.float32)

    gen_params, disc_params = make_params(kp, C, HID, NCLS, disc_names)
    trainer = Trainer(gen_params, disc_params)

    # Generator-training branch (training_dis=False)
    anonymized_x, outs, outs_feat, n1, n2, outsp, outs_featp = trainer(x, training_dis=False)
    jax.block_until_ready(anonymized_x)
    for d in (outs, outs_feat, outsp, outs_featp):
        for v in d.values():
            jax.block_until_ready(v)

    # Discriminator-training branch (training_dis=True)
    outsp2, outs_featp2 = trainer(x, training_dis=True)
    for d in (outsp2, outs_featp2):
        for v in d.values():
            jax.block_until_ready(v)

    # Standalone anonymize (exercises the gen-only kernel)
    a_only = trainer.anonymize(x)
    jax.block_until_ready(a_only)

    # ---- shape checks ----
    assert anonymized_x.shape == (B, C, H, W)
    assert n1 is None and n2 is None
    assert outs["speaker"].shape == (B, NCLS)
    assert outs_feat["infonce"].shape == (B, HID)
    assert outsp2["speaker"].shape == (B, NCLS)
    assert outs_featp2["infonce"].shape == (B, HID)

    # ---- numerical sanity vs pure-JAX reference ----
    hp = jax.lax.Precision.HIGHEST
    gw, gb = gen_params
    a_ref = jnp.tanh(jnp.einsum("oc,bchw->bohw", gw, x, precision=hp)
                     + gb.reshape(1, C, 1, 1))

    def ref_disc(inp_nchw, p):
        w1, b1, w2, b2 = p
        pooled = jnp.mean(inp_nchw, axis=(2, 3))
        feat = jnp.maximum(jnp.einsum("bc,ch->bh", pooled, w1, precision=hp) + b1, 0.0)
        logits = jnp.einsum("bh,hn->bn", feat, w2, precision=hp) + b2
        return logits, feat

    tol = dict(atol=2e-3, rtol=2e-3)
    assert jnp.allclose(anonymized_x, a_ref, **tol)
    assert jnp.allclose(a_only, a_ref, **tol)
    for name in disc_names:
        l_r, f_r = ref_disc(x, disc_params[name])
        assert jnp.allclose(outs[name], l_r, **tol)
        assert jnp.allclose(outs_feat[name], f_r, **tol)
        # xp params are value-equal copies (infonce shared), so the same
        # reference weights apply.
        l_rp, f_rp = ref_disc(a_ref, disc_params[name])
        assert jnp.allclose(outsp[name], l_rp, **tol)
        assert jnp.allclose(outs_featp[name], f_rp, **tol)
        assert jnp.allclose(outsp2[name], l_r, **tol)
        assert jnp.allclose(outs_featp2[name], f_r, **tol)

    print("KERNEL_OK")
</pallas_src>

<mosaic_0001>
module attributes {stable_mosaic.version = 11 : i64} {
  func.func @kernel(%arg0: i32, %arg1: i32, %arg2: memref<1x4x256xf32, #tpu.memory_space<vmem>>, %arg3: memref<4x4xf32, #tpu.memory_space<vmem>>, %arg4: memref<4x1xf32, #tpu.memory_space<vmem>>, %arg5: memref<64x4xf32, #tpu.memory_space<vmem>>, %arg6: memref<64x1xf32, #tpu.memory_space<vmem>>, %arg7: memref<16x64xf32, #tpu.memory_space<vmem>>, %arg8: memref<16x1xf32, #tpu.memory_space<vmem>>, %arg9: memref<64x4xf32, #tpu.memory_space<vmem>>, %arg10: memref<64x1xf32, #tpu.memory_space<vmem>>, %arg11: memref<16x64xf32, #tpu.memory_space<vmem>>, %arg12: memref<16x1xf32, #tpu.memory_space<vmem>>, %arg13: memref<1x4x256xf32, #tpu.memory_space<vmem>>, %arg14: memref<1x16x1xf32, #tpu.memory_space<vmem>>, %arg15: memref<1x64x1xf32, #tpu.memory_space<vmem>>, %arg16: memref<1x16x1xf32, #tpu.memory_space<vmem>>, %arg17: memref<1x64x1xf32, #tpu.memory_space<vmem>>, %arg18: memref<4x1xf32, #tpu.memory_space<vmem>>, %arg19: memref<4x1xf32, #tpu.memory_space<vmem>>) attributes {dimension_semantics = [#tpu.dimension_semantics<parallel>, #tpu.dimension_semantics<arbitrary>], iteration_bounds = array<i64: 2, 1>, scalar_prefetch = 0 : i64, scratch_operands = 2 : i64, tpu.core_type = #tpu.core_type<tc>, window_params = [{transform_indices = @transform_0, window_bounds = array<i64: 1, 4, 256>}, {pipeline_mode = #tpu.pipeline_mode<synchronous>, transform_indices = @transform_1, window_bounds = array<i64: 4, 4>}, {pipeline_mode = #tpu.pipeline_mode<synchronous>, transform_indices = @transform_2, window_bounds = array<i64: 4, 1>}, {pipeline_mode = #tpu.pipeline_mode<synchronous>, transform_indices = @transform_3, window_bounds = array<i64: 64, 4>}, {pipeline_mode = #tpu.pipeline_mode<synchronous>, transform_indices = @transform_4, window_bounds = array<i64: 64, 1>}, {pipeline_mode = #tpu.pipeline_mode<synchronous>, transform_indices = @transform_5, window_bounds = array<i64: 16, 64>}, {pipeline_mode = #tpu.pipeline_mode<synchronous>, transform_indices = @transform_6, window_bounds = array<i64: 16, 1>}, {pipeline_mode = #tpu.pipeline_mode<synchronous>, transform_indices = @transform_7, window_bounds = array<i64: 64, 4>}, {pipeline_mode = #tpu.pipeline_mode<synchronous>, transform_indices = @transform_8, window_bounds = array<i64: 64, 1>}, {pipeline_mode = #tpu.pipeline_mode<synchronous>, transform_indices = @transform_9, window_bounds = array<i64: 16, 64>}, {pipeline_mode = #tpu.pipeline_mode<synchronous>, transform_indices = @transform_10, window_bounds = array<i64: 16, 1>}, {transform_indices = @transform_11, window_bounds = array<i64: 1, 4, 256>}, {transform_indices = @transform_12, window_bounds = array<i64: 1, 16, 1>}, {transform_indices = @transform_13, window_bounds = array<i64: 1, 64, 1>}, {transform_indices = @transform_14, window_bounds = array<i64: 1, 16, 1>}, {transform_indices = @transform_15, window_bounds = array<i64: 1, 64, 1>}]} {
    %c0 = arith.constant 0 : index
    %c0_0 = arith.constant 0 : index
    %c0_1 = arith.constant 0 : index
    %0 = vector.load %arg2[%c0, %c0_0, %c0_1] : memref<1x4x256xf32, #tpu.memory_space<vmem>>, vector<1x4x256xf32>
    %1 = vector.shape_cast %0 : vector<1x4x256xf32> to vector<4x256xf32>
    %c0_2 = arith.constant 0 : index
    %c0_3 = arith.constant 0 : index
    %2 = vector.load %arg3[%c0_2, %c0_3] : memref<4x4xf32, #tpu.memory_space<vmem>>, vector<4x4xf32>
    %cst = arith.constant dense<0.000000e+00> : vector<4x256xf32>
    %3 = tpu.matmul %2, %1, %cst {dimension_numbers = #tpu.dot_dimension_numbers<[1], [0], [0], [1], [0, 0, 1, 1], [], []>} : vector<4x4xf32>, vector<4x256xf32>, vector<4x256xf32> -> vector<4x256xf32>
    %c0_4 = arith.constant 0 : index
    %c0_5 = arith.constant 0 : index
    %4 = vector.load %arg4[%c0_4, %c0_5] : memref<4x1xf32, #tpu.memory_space<vmem>>, vector<4x1xf32>
    %5 = vector.broadcast %4 : vector<4x1xf32> to vector<4x256xf32>
    %6 = arith.addf %3, %5 : vector<4x256xf32>
    %7 = math.tanh %6 : vector<4x256xf32>
    %c0_6 = arith.constant 0 : index
    %c0_7 = arith.constant 0 : index
    %c0_8 = arith.constant 0 : index
    %8 = vector.load %arg13[%c0_6, %c0_7, %c0_8] : memref<1x4x256xf32, #tpu.memory_space<vmem>>, vector<1x4x256xf32>
    %9 = vector.shape_cast %8 : vector<1x4x256xf32> to vector<4x256xf32>
    %10 = vector.shape_cast %7 : vector<4x256xf32> to vector<1x4x256xf32>
    tpu.vector_store %arg13[%c0_6, %c0_7, %c0_8], %10 {strides = array<i32>} : memref<1x4x256xf32, #tpu.memory_space<vmem>>, vector<1x4x256xf32>,
    %c0_i32 = arith.constant 0 : i32
    %11 = arith.cmpi eq, %arg1, %c0_i32 : i32
    %12 = arith.extui %11 : i1 to i32
    %c0_i32_9 = arith.constant 0 : i32
    %13 = arith.cmpi ne, %12, %c0_i32_9 : i32
    scf.if %13 {
      %cst_22 = arith.constant 0.000000e+00 : f32
      %27 = vector.broadcast %cst_22 : f32 to vector<4x1xf32>
      %c0_23 = arith.constant 0 : index
      %c0_24 = arith.constant 0 : index
      %28 = vector.load %arg18[%c0_23, %c0_24] : memref<4x1xf32, #tpu.memory_space<vmem>>, vector<4x1xf32>
      tpu.vector_store %arg18[%c0_23, %c0_24], %27 {strides = array<i32>} : memref<4x1xf32, #tpu.memory_space<vmem>>, vector<4x1xf32>,
      %cst_25 = arith.constant 0.000000e+00 : f32
      %29 = vector.broadcast %cst_25 : f32 to vector<4x1xf32>
      %c0_26 = arith.constant 0 : index
      %c0_27 = arith.constant 0 : index
      %30 = vector.load %arg19[%c0_26, %c0_27] : memref<4x1xf32, #tpu.memory_space<vmem>>, vector<4x1xf32>
      tpu.vector_store %arg19[%c0_26, %c0_27], %29 {strides = array<i32>} : memref<4x1xf32, #tpu.memory_space<vmem>>, vector<4x1xf32>,
    } else {
    }
    %c0_10 = arith.constant 0 : index
    %c0_11 = arith.constant 0 : index
    %14 = vector.load %arg18[%c0_10, %c0_11] : memref<4x1xf32, #tpu.memory_space<vmem>>, vector<4x1xf32>
    %cst_12 = arith.constant dense<0.000000e+00> : vector<4xf32>
    %15 = vector.multi_reduction <add>, %1, %cst_12 [1] : vector<4x256xf32> to vector<4xf32>
    %16 = vector.shape_cast %15 : vector<4xf32> to vector<4x1xf32>
    %17 = arith.addf %14, %16 : vector<4x1xf32>
    %c0_13 = arith.constant 0 : index
    %c0_14 = arith.constant 0 : index
    %18 = vector.load %arg18[%c0_13, %c0_14] : memref<4x1xf32, #tpu.memory_space<vmem>>, vector<4x1xf32>
    tpu.vector_store %arg18[%c0_13, %c0_14], %17 {strides = array<i32>} : memref<4x1xf32, #tpu.memory_space<vmem>>, vector<4x1xf32>,
    %c0_15 = arith.constant 0 : index
    %c0_16 = arith.constant 0 : index
    %19 = vector.load %arg19[%c0_15, %c0_16] : memref<4x1xf32, #tpu.memory_space<vmem>>, vector<4x1xf32>
    %cst_17 = arith.constant dense<0.000000e+00> : vector<4xf32>
    %20 = vector.multi_reduction <add>, %7, %cst_17 [1] : vector<4x256xf32> to vector<4xf32>
    %21 = vector.shape_cast %20 : vector<4xf32> to vector<4x1xf32>
    %22 = arith.addf %19, %21 : vector<4x1xf32>
    %c0_18 = arith.constant 0 : index
    %c0_19 = arith.constant 0 : index
    %23 = vector.load %arg19[%c0_18, %c0_19] : memref<4x1xf32, #tpu.memory_space<vmem>>, vector<4x1xf32>
    tpu.vector_store %arg19[%c0_18, %c0_19], %22 {strides = array<i32>} : memref<4x1xf32, #tpu.memory_space<vmem>>, vector<4x1xf32>,
    %c0_i32_20 = arith.constant 0 : i32
    %24 = arith.cmpi eq, %arg1, %c0_i32_20 : i32
    %25 = arith.extui %24 : i1 to i32
    %c0_i32_21 = arith.constant 0 : i32
    %26 = arith.cmpi ne, %25, %c0_i32_21 : i32
    scf.if %26 {
      %c0_22 = arith.constant 0 : index
      %c0_23 = arith.constant 0 : index
      %27 = vector.load %arg18[%c0_22, %c0_23] : memref<4x1xf32, #tpu.memory_space<vmem>>, vector<4x1xf32>
      %cst_24 = arith.constant 3.906250e-03 : f32
      %28 = vector.broadcast %cst_24 : f32 to vector<4x1xf32>
      %29 = arith.mulf %27, %28 : vector<4x1xf32>
      %c0_25 = arith.constant 0 : index
      %c0_26 = arith.constant 0 : index
      %30 = vector.load %arg19[%c0_25, %c0_26] : memref<4x1xf32, #tpu.memory_space<vmem>>, vector<4x1xf32>
      %cst_27 = arith.constant 3.906250e-03 : f32
      %31 = vector.broadcast %cst_27 : f32 to vector<4x1xf32>
      %32 = arith.mulf %30, %31 : vector<4x1xf32>
      %c0_28 = arith.constant 0 : index
      %c0_29 = arith.constant 0 : index
      %33 = vector.load %arg5[%c0_28, %c0_29] : memref<64x4xf32, #tpu.memory_space<vmem>>, vector<64x4xf32>
      %cst_30 = arith.constant dense<0.000000e+00> : vector<64x1xf32>
      %34 = tpu.matmul %33, %29, %cst_30 {dimension_numbers = #tpu.dot_dimension_numbers<[1], [0], [0], [1], [0, 0, 1, 1], [], []>} : vector<64x4xf32>, vector<4x1xf32>, vector<64x1xf32> -> vector<64x1xf32>
      %c0_31 = arith.constant 0 : index
      %c0_32 = arith.constant 0 : index
      %35 = vector.load %arg6[%c0_31, %c0_32] : memref<64x1xf32, #tpu.memory_space<vmem>>, vector<64x1xf32>
      %36 = arith.addf %34, %35 : vector<64x1xf32>
      %cst_33 = arith.constant 0.000000e+00 : f32
      %37 = vector.broadcast %cst_33 : f32 to vector<64x1xf32>
      %38 = arith.maximumf %36, %37 : vector<64x1xf32>
      %c0_34 = arith.constant 0 : index
      %c0_35 = arith.constant 0 : index
      %39 = vector.load %arg7[%c0_34, %c0_35] : memref<16x64xf32, #tpu.memory_space<vmem>>, vector<16x64xf32>
      %cst_36 = arith.constant dense<0.000000e+00> : vector<16x1xf32>
      %40 = tpu.matmul %39, %38, %cst_36 {dimension_numbers = #tpu.dot_dimension_numbers<[1], [0], [0], [1], [0, 0, 1, 1], [], []>} : vector<16x64xf32>, vector<64x1xf32>, vector<16x1xf32> -> vector<16x1xf32>
      %c0_37 = arith.constant 0 : index
      %c0_38 = arith.constant 0 : index
      %41 = vector.load %arg8[%c0_37, %c0_38] : memref<16x1xf32, #tpu.memory_space<vmem>>, vector<16x1xf32>
      %42 = arith.addf %40, %41 : vector<16x1xf32>
      %c0_39 = arith.constant 0 : index
      %c0_40 = arith.constant 0 : index
      %43 = vector.load %arg9[%c0_39, %c0_40] : memref<64x4xf32, #tpu.memory_space<vmem>>, vector<64x4xf32>
      %cst_41 = arith.constant dense<0.000000e+00> : vector<64x1xf32>
      %44 = tpu.matmul %43, %32, %cst_41 {dimension_numbers = #tpu.dot_dimension_numbers<[1], [0], [0], [1], [0, 0, 1, 1], [], []>} : vector<64x4xf32>, vector<4x1xf32>, vector<64x1xf32> -> vector<64x1xf32>
      %c0_42 = arith.constant 0 : index
      %c0_43 = arith.constant 0 : index
      %45 = vector.load %arg10[%c0_42, %c0_43] : memref<64x1xf32, #tpu.memory_space<vmem>>, vector<64x1xf32>
      %46 = arith.addf %44, %45 : vector<64x1xf32>
      %cst_44 = arith.constant 0.000000e+00 : f32
      %47 = vector.broadcast %cst_44 : f32 to vector<64x1xf32>
      %48 = arith.maximumf %46, %47 : vector<64x1xf32>
      %c0_45 = arith.constant 0 : index
      %c0_46 = arith.constant 0 : index
      %49 = vector.load %arg11[%c0_45, %c0_46] : memref<16x64xf32, #tpu.memory_space<vmem>>, vector<16x64xf32>
      %cst_47 = arith.constant dense<0.000000e+00> : vector<16x1xf32>
      %50 = tpu.matmul %49, %48, %cst_47 {dimension_numbers = #tpu.dot_dimension_numbers<[1], [0], [0], [1], [0, 0, 1, 1], [], []>} : vector<16x64xf32>, vector<64x1xf32>, vector<16x1xf32> -> vector<16x1xf32>
      %c0_48 = arith.constant 0 : index
      %c0_49 = arith.constant 0 : index
      %51 = vector.load %arg12[%c0_48, %c0_49] : memref<16x1xf32, #tpu.memory_space<vmem>>, vector<16x1xf32>
      %52 = arith.addf %50, %51 : vector<16x1xf32>
      %c0_50 = arith.constant 0 : index
      %c0_51 = arith.constant 0 : index
      %c0_52 = arith.constant 0 : index
      %53 = vector.load %arg15[%c0_50, %c0_51, %c0_52] : memref<1x64x1xf32, #tpu.memory_space<vmem>>, vector<1x64x1xf32>
      %54 = vector.shape_cast %53 : vector<1x64x1xf32> to vector<64x1xf32>
      %55 = vector.shape_cast %38 : vector<64x1xf32> to vector<1x64x1xf32>
      tpu.vector_store %arg15[%c0_50, %c0_51, %c0_52], %55 {strides = array<i32>} : memref<1x64x1xf32, #tpu.memory_space<vmem>>, vector<1x64x1xf32>,
      %c0_53 = arith.constant 0 : index
      %c0_54 = arith.constant 0 : index
      %c0_55 = arith.constant 0 : index
      %56 = vector.load %arg14[%c0_53, %c0_54, %c0_55] : memref<1x16x1xf32, #tpu.memory_space<vmem>>, vector<1x16x1xf32>
      %57 = vector.shape_cast %56 : vector<1x16x1xf32> to vector<16x1xf32>
      %58 = vector.shape_cast %42 : vector<16x1xf32> to vector<1x16x1xf32>
      tpu.vector_store %arg14[%c0_53, %c0_54, %c0_55], %58 {strides = array<i32>} : memref<1x16x1xf32, #tpu.memory_space<vmem>>, vector<1x16x1xf32>,
      %c0_56 = arith.constant 0 : index
      %c0_57 = arith.constant 0 : index
      %c0_58 = arith.constant 0 : index
      %59 = vector.load %arg17[%c0_56, %c0_57, %c0_58] : memref<1x64x1xf32, #tpu.memory_space<vmem>>, vector<1x64x1xf32>
      %60 = vector.shape_cast %59 : vector<1x64x1xf32> to vector<64x1xf32>
      %61 = vector.shape_cast %48 : vector<64x1xf32> to vector<1x64x1xf32>
      tpu.vector_store %arg17[%c0_56, %c0_57, %c0_58], %61 {strides = array<i32>} : memref<1x64x1xf32, #tpu.memory_space<vmem>>, vector<1x64x1xf32>,
      %c0_59 = arith.constant 0 : index
      %c0_60 = arith.constant 0 : index
      %c0_61 = arith.constant 0 : index
      %62 = vector.load %arg16[%c0_59, %c0_60, %c0_61] : memref<1x16x1xf32, #tpu.memory_space<vmem>>, vector<1x16x1xf32>
      %63 = vector.shape_cast %62 : vector<1x16x1xf32> to vector<16x1xf32>
      %64 = vector.shape_cast %52 : vector<16x1xf32> to vector<1x16x1xf32>
      tpu.vector_store %arg16[%c0_59, %c0_60, %c0_61], %64 {strides = array<i32>} : memref<1x16x1xf32, #tpu.memory_space<vmem>>, vector<1x16x1xf32>,
    } else {
    }
    return
  }
  func.func @transform_0(%arg0: i32, %arg1: i32) -> (i32, i32, i32) {
    %c0_i32 = arith.constant 0 : i32
    %c0_i32_0 = arith.constant 0 : i32
    return %arg0, %c0_i32, %arg1 : i32, i32, i32
  }
  func.func @transform_1(%arg0: i32, %arg1: i32) -> (i32, i32) {
    %c0_i32 = arith.constant 0 : i32
    %c0_i32_0 = arith.constant 0 : i32
    %c0_i32_1 = arith.constant 0 : i32
    return %c0_i32, %c0_i32_0 : i32, i32
  }
  func.func @transform_2(%arg0: i32, %arg1: i32) -> (i32, i32) {
    %c0_i32 = arith.constant 0 : i32
    %c0_i32_0 = arith.constant 0 : i32
    %c0_i32_1 = arith.constant 0 : i32
    return %c0_i32, %c0_i32_0 : i32, i32
  }
  func.func @transform_3(%arg0: i32, %arg1: i32) -> (i32, i32) {
    %c0_i32 = arith.constant 0 : i32
    %c0_i32_0 = arith.constant 0 : i32
    %c0_i32_1 = arith.constant 0 : i32
    return %c0_i32, %c0_i32_0 : i32, i32
  }
  func.func @transform_4(%arg0: i32, %arg1: i32) -> (i32, i32) {
    %c0_i32 = arith.constant 0 : i32
    %c0_i32_0 = arith.constant 0 : i32
    %c0_i32_1 = arith.constant 0 : i32
    return %c0_i32, %c0_i32_0 : i32, i32
  }
  func.func @transform_5(%arg0: i32, %arg1: i32) -> (i32, i32) {
    %c0_i32 = arith.constant 0 : i32
    %c0_i32_0 = arith.constant 0 : i32
    %c0_i32_1 = arith.constant 0 : i32
    return %c0_i32, %c0_i32_0 : i32, i32
  }
  func.func @transform_6(%arg0: i32, %arg1: i32) -> (i32, i32) {
    %c0_i32 = arith.constant 0 : i32
    %c0_i32_0 = arith.constant 0 : i32
    %c0_i32_1 = arith.constant 0 : i32
    return %c0_i32, %c0_i32_0 : i32, i32
  }
  func.func @transform_7(%arg0: i32, %arg1: i32) -> (i32, i32) {
    %c0_i32 = arith.constant 0 : i32
    %c0_i32_0 = arith.constant 0 : i32
    %c0_i32_1 = arith.constant 0 : i32
    return %c0_i32, %c0_i32_0 : i32, i32
  }
  func.func @transform_8(%arg0: i32, %arg1: i32) -> (i32, i32) {
    %c0_i32 = arith.constant 0 : i32
    %c0_i32_0 = arith.constant 0 : i32
    %c0_i32_1 = arith.constant 0 : i32
    return %c0_i32, %c0_i32_0 : i32, i32
  }
  func.func @transform_9(%arg0: i32, %arg1: i32) -> (i32, i32) {
    %c0_i32 = arith.constant 0 : i32
    %c0_i32_0 = arith.constant 0 : i32
    %c0_i32_1 = arith.constant 0 : i32
    return %c0_i32, %c0_i32_0 : i32, i32
  }
  func.func @transform_10(%arg0: i32, %arg1: i32) -> (i32, i32) {
    %c0_i32 = arith.constant 0 : i32
    %c0_i32_0 = arith.constant 0 : i32
    %c0_i32_1 = arith.constant 0 : i32
    return %c0_i32, %c0_i32_0 : i32, i32
  }
  func.func @transform_11(%arg0: i32, %arg1: i32) -> (i32, i32, i32) {
    %c0_i32 = arith.constant 0 : i32
    %c0_i32_0 = arith.constant 0 : i32
    return %arg0, %c0_i32, %arg1 : i32, i32, i32
  }
  func.func @transform_12(%arg0: i32, %arg1: i32) -> (i32, i32, i32) {
    %c0_i32 = arith.constant 0 : i32
    %c0_i32_0 = arith.constant 0 : i32
    %c0_i32_1 = arith.constant 0 : i32
    return %arg0, %c0_i32, %c0_i32_0 : i32, i32, i32
  }
  func.func @transform_13(%arg0: i32, %arg1: i32) -> (i32, i32, i32) {
    %c0_i32 = arith.constant 0 : i32
    %c0_i32_0 = arith.constant 0 : i32
    %c0_i32_1 = arith.constant 0 : i32
    return %arg0, %c0_i32, %c0_i32_0 : i32, i32, i32
  }
  func.func @transform_14(%arg0: i32, %arg1: i32) -> (i32, i32, i32) {
    %c0_i32 = arith.constant 0 : i32
    %c0_i32_0 = arith.constant 0 : i32
    %c0_i32_1 = arith.constant 0 : i32
    return %arg0, %c0_i32, %c0_i32_0 : i32, i32, i32
  }
  func.func @transform_15(%arg0: i32, %arg1: i32) -> (i32, i32, i32) {
    %c0_i32 = arith.constant 0 : i32
    %c0_i32_0 = arith.constant 0 : i32
    %c0_i32_1 = arith.constant 0 : i32
    return %arg0, %c0_i32, %c0_i32_0 : i32, i32, i32
  }
}

</mosaic_0001>

<llo_original>
// kernel: tpu_custom_call.1
$region0: #{tpu_custom_call.1}
  #allocation0 [shape = 'u32[]', space=smem, size = 0x4, offset = 0x4, fixed_abs, tag = 'smem constant byte address 0x4 - core index']
  #allocation1 [shape = 'u32[144,128]{1,0:T(1,128)}', space=vmem, size = 0x12000, scoped, tag = 'internal scratch']
  #allocation2 [shape = 'f32[4,1]{1,0:T(4,128)}', space=vmem, size = 0x800, scoped, tag = 'scratch operand']
  #allocation3 [shape = 'f32[4,1]{1,0:T(4,128)}', space=vmem, size = 0x800, scoped, tag = 'scratch operand']
  %s0 = inlined_call_operand.vmem [shape: f32[2,4,256], index: 0, kind: input, shape index: {}]
  %s1 = inlined_call_operand.vmem [shape: f32[4,4], index: 1, kind: input, shape index: {}]
  %s2 = inlined_call_operand.vmem [shape: f32[4,1], index: 2, kind: input, shape index: {}]
  %s3 = inlined_call_operand.vmem [shape: f32[64,4], index: 3, kind: input, shape index: {}]
  %s4 = inlined_call_operand.vmem [shape: f32[64,1], index: 4, kind: input, shape index: {}]
  %s5 = inlined_call_operand.vmem [shape: f32[16,64], index: 5, kind: input, shape index: {}]
  %s6 = inlined_call_operand.vmem [shape: f32[16,1], index: 6, kind: input, shape index: {}]
  %s7 = inlined_call_operand.vmem [shape: f32[64,4], index: 7, kind: input, shape index: {}]
  %s8 = inlined_call_operand.vmem [shape: f32[64,1], index: 8, kind: input, shape index: {}]
  %s9 = inlined_call_operand.vmem [shape: f32[16,64], index: 9, kind: input, shape index: {}]
  %s10 = inlined_call_operand.vmem [shape: f32[16,1], index: 10, kind: input, shape index: {}]
  %s11 = inlined_call_operand.hbm [shape: f32[2,4,256], index: 11, kind: output, shape index: {0}]
  %s12 = inlined_call_operand.vmem [shape: f32[2,16,1], index: 12, kind: output, shape index: {1}]
  %s13 = inlined_call_operand.vmem [shape: f32[2,64,1], index: 13, kind: output, shape index: {2}]
  %s14 = inlined_call_operand.vmem [shape: f32[2,16,1], index: 14, kind: output, shape index: {3}]
  %s15 = inlined_call_operand.vmem [shape: f32[2,64,1], index: 15, kind: output, shape index: {4}]
  %16 = xla_tuple %s11, %s12, %s13, %s14, %s15
  %s17 = sld [smem:[#allocation0]]
  $region117: #{tpu_custom_call.1} parent=0
    _
  %s19 = ssub.s32 1, %s17
  %s20 = scalar_select 0, %s19, %s17
  $region1: #{tpu_custom_call.1} parent=0
    #allocation4 [shape = 'u8[8192]{0}', space=vmem, size = 0x2000, scoped, tag = 'output window, operand 0']
    #allocation5 [shape = 's32[2]{0}', space=sflag, size = 0x8, scoped, tag = 'scoped memory for tpu_custom_call.1']
    %21 = vsyncpa [#allocation5], 0
    %s22 = scalar_lea.sflag [#allocation5], 1
    %23 = vsyncpa %s22, 0
    loop: start=0, step=1, limit=4
    $region2: #{tpu_custom_call.1} parent=1 // loop_pre_header
      _
    $region3: #{tpu_custom_call.1} parent=1 // loop_header
      %s25 = sphi 0, %s29
      %p26 = scmp.ge.s32.totalorder %s25, 4
      %s32 = sphi 0, %s44
      %s33 = sphi 0, %s40
      %s34 = sphi 0, %s32
      %s35 = sphi 0, %s33
      %s36 = sphi 0, %s34
      %s37 = sphi 0, %s35
      %s49 = sphi 0, %s51
      %s52 = sphi 0, %s49
      %s53 = sphi 0, %s52
      %s69 = sphi 0, %s53
      %s73 = sphi 0, %s73
      %s75 = sphi 0, %s73
      %s76 = sphi 0, %s75
      %s90 = sphi 0, %s76
      %s94 = sphi 0, %s94
      %s96 = sphi 0, %s94
      %s97 = sphi 0, %s96
      %s111 = sphi 0, %s97
      %s115 = sphi 0, %s115
      %s117 = sphi 0, %s115
      %s118 = sphi 0, %s117
      %s132 = sphi 0, %s118
      %s136 = sphi 0, %s136
      %s138 = sphi 0, %s136
      %s139 = sphi 0, %s138
      %s153 = sphi 0, %s139
      %s157 = sphi 0, %s157
      %s159 = sphi 0, %s157
      %s160 = sphi 0, %s159
      %s174 = sphi 0, %s160
      %s178 = sphi 0, %s178
      %s180 = sphi 0, %s178
      %s181 = sphi 0, %s180
      %s195 = sphi 0, %s181
      %s199 = sphi 0, %s199
      %s201 = sphi 0, %s199
      %s202 = sphi 0, %s201
      %s216 = sphi 0, %s202
      %s220 = sphi 0, %s220
      %s222 = sphi 0, %s220
      %s223 = sphi 0, %s222
      %s237 = sphi 0, %s223
      %s241 = sphi 0, %s241
      %s243 = sphi 0, %s241
      %s244 = sphi 0, %s243
      %s258 = sphi 0, %s244
      %s262 = sphi 0, %s262
      %s264 = sphi 0, %s262
      %s265 = sphi 0, %s264
      %s279 = sphi 0, %s265
      %s287 = sphi 0, %s289
      %s290 = sphi 0, %s287
      %s291 = sphi 0, %s290
      %s307 = sphi 0, %s291
      %s313 = sphi 0, %s315
      %s316 = sphi 0, %s313
      %s317 = sphi 0, %s316
      %s333 = sphi 0, %s317
      %s339 = sphi 0, %s341
      %s342 = sphi 0, %s339
      %s343 = sphi 0, %s342
      %s359 = sphi 0, %s343
      %s365 = sphi 0, %s367
      %s368 = sphi 0, %s365
      %s369 = sphi 0, %s368
      %s385 = sphi 0, %s369
      %s391 = sphi 0, %s393
      %s394 = sphi 0, %s391
      %s395 = sphi 0, %s394
      %s411 = sphi 0, %s395
    $region4: #{tpu_custom_call.1} parent=1 // loop_header_branch
      %28 = sbr.rel (%p26) target = $region8
    $region5: #{tpu_custom_call.1} parent=1 // loop_body
      %s30 = ssub.s32 %s25, 1
      %s31 = ssub.s32 %s25, 2
      %s38 = sadd.s32 1, %s33
      %p39 = scmp.ge.s32.totalorder %s38, 1
      %s40 = scalar_select %p39, 0, %s38
      %s41 = sadd.s32 1, %s32
      %s42 = scalar_select %p39, %s41, %s32
      %p43 = scmp.ge.s32.totalorder %s42, 2
      %s44 = scalar_select %p43, 0, %s42
      %s45 = ssub.s32 %s32, %s44
      %s46 = ssub.s32 %s33, %s40
      %s47 = sor.u32 %s45, %s46
      %p48 = scmp.eq.s32.totalorder %s47, 0
      %s50 = sadd.s32 %s49, 1
      %s51 = scalar_select %p48, %s49, %s50
      %p54 = pneg %p48
      %p55 = scmp.eq.s32.totalorder %s25, 1
      %p56 = por %p54, %p55
      %p57 = scmp.ne.s32.totalorder %s49, %s52
      %p58 = scmp.eq.s32.totalorder %s25, 0
      %p59 = por %p57, %p58
      %p60 = scmp.ne.s32.totalorder %s49, %s52
      %p61 = scmp.eq.s32.totalorder %s30, 1
      %p62 = por %p60, %p61
      %p63 = scmp.ne.s32.totalorder %s52, %s53
      %p64 = scmp.eq.s32.totalorder %s30, 0
      %p65 = por %p63, %p64
      %p66 = scmp.ne.s32.totalorder %s52, %s53
      %p67 = scmp.eq.s32.totalorder %s31, 1
      %p68 = por %p66, %p67
      %p70 = scmp.ne.s32.totalorder %s53, %s69
      %p71 = scmp.eq.s32.totalorder %s31, 0
      %p72 = por %p70, %p71
      %s74 = sadd.s32 %s73, 1
      %p77 = scmp.eq.s32.totalorder %s25, 1
      %p78 = scmp.ne.s32.totalorder %s73, %s75
      %p79 = scmp.eq.s32.totalorder %s25, 0
      %p80 = por %p78, %p79
      %p81 = scmp.ne.s32.totalorder %s73, %s75
      %p82 = scmp.eq.s32.totalorder %s30, 1
      %p83 = por %p81, %p82
      %p84 = scmp.ne.s32.totalorder %s75, %s76
      %p85 = scmp.eq.s32.totalorder %s30, 0
      %p86 = por %p84, %p85
      %p87 = scmp.ne.s32.totalorder %s75, %s76
      %p88 = scmp.eq.s32.totalorder %s31, 1
      %p89 = por %p87, %p88
      %p91 = scmp.ne.s32.totalorder %s76, %s90
      %p92 = scmp.eq.s32.totalorder %s31, 0
      %p93 = por %p91, %p92
      %s95 = sadd.s32 %s94, 1
      %p98 = scmp.eq.s32.totalorder %s25, 1
      %p99 = scmp.ne.s32.totalorder %s94, %s96
      %p100 = scmp.eq.s32.totalorder %s25, 0
      %p101 = por %p99, %p100
      %p102 = scmp.ne.s32.totalorder %s94, %s96
      %p103 = scmp.eq.s32.totalorder %s30, 1
      %p104 = por %p102, %p103
      %p105 = scmp.ne.s32.totalorder %s96, %s97
      %p106 = scmp.eq.s32.totalorder %s30, 0
      %p107 = por %p105, %p106
      %p108 = scmp.ne.s32.totalorder %s96, %s97
      %p109 = scmp.eq.s32.totalorder %s31, 1
      %p110 = por %p108, %p109
      %p112 = scmp.ne.s32.totalorder %s97, %s111
      %p113 = scmp.eq.s32.totalorder %s31, 0
      %p114 = por %p112, %p113
      %s116 = sadd.s32 %s115, 1
      %p119 = scmp.eq.s32.totalorder %s25, 1
      %p120 = scmp.ne.s32.totalorder %s115, %s117
      %p121 = scmp.eq.s32.totalorder %s25, 0
      %p122 = por %p120, %p121
      %p123 = scmp.ne.s32.totalorder %s115, %s117
      %p124 = scmp.eq.s32.totalorder %s30, 1
      %p125 = por %p123, %p124
      %p126 = scmp.ne.s32.totalorder %s117, %s118
      %p127 = scmp.eq.s32.totalorder %s30, 0
      %p128 = por %p126, %p127
      %p129 = scmp.ne.s32.totalorder %s117, %s118
      %p130 = scmp.eq.s32.totalorder %s31, 1
      %p131 = por %p129, %p130
      %p133 = scmp.ne.s32.totalorder %s118, %s132
      %p134 = scmp.eq.s32.totalorder %s31, 0
      %p135 = por %p133, %p134
      %s137 = sadd.s32 %s136, 1
      %p140 = scmp.eq.s32.totalorder %s25, 1
      %p141 = scmp.ne.s32.totalorder %s136, %s138
      %p142 = scmp.eq.s32.totalorder %s25, 0
      %p143 = por %p141, %p142
      %p144 = scmp.ne.s32.totalorder %s136, %s138
      %p145 = scmp.eq.s32.totalorder %s30, 1
      %p146 = por %p144, %p145
      %p147 = scmp.ne.s32.totalorder %s138, %s139
      %p148 = scmp.eq.s32.totalorder %s30, 0
      %p149 = por %p147, %p148
      %p150 = scmp.ne.s32.totalorder %s138, %s139
      %p151 = scmp.eq.s32.totalorder %s31, 1
      %p152 = por %p150, %p151
      %p154 = scmp.ne.s32.totalorder %s139, %s153
      %p155 = scmp.eq.s32.totalorder %s31, 0
      %p156 = por %p154, %p155
      %s158 = sadd.s32 %s157, 1
      %p161 = scmp.eq.s32.totalorder %s25, 1
      %p162 = scmp.ne.s32.totalorder %s157, %s159
      %p163 = scmp.eq.s32.totalorder %s25, 0
      %p164 = por %p162, %p163
      %p165 = scmp.ne.s32.totalorder %s157, %s159
      %p166 = scmp.eq.s32.totalorder %s30, 1
      %p167 = por %p165, %p166
      %p168 = scmp.ne.s32.totalorder %s159, %s160
      %p169 = scmp.eq.s32.totalorder %s30, 0
      %p170 = por %p168, %p169
      %p171 = scmp.ne.s32.totalorder %s159, %s160
      %p172 = scmp.eq.s32.totalorder %s31, 1
      %p173 = por %p171, %p172
      %p175 = scmp.ne.s32.totalorder %s160, %s174
      %p176 = scmp.eq.s32.totalorder %s31, 0
      %p177 = por %p175, %p176
      %s179 = sadd.s32 %s178, 1
      %p182 = scmp.eq.s32.totalorder %s25, 1
      %p183 = scmp.ne.s32.totalorder %s178, %s180
      %p184 = scmp.eq.s32.totalorder %s25, 0
      %p185 = por %p183, %p184
      %p186 = scmp.ne.s32.totalorder %s178, %s180
      %p187 = scmp.eq.s32.totalorder %s30, 1
      %p188 = por %p186, %p187
      %p189 = scmp.ne.s32.totalorder %s180, %s181
      %p190 = scmp.eq.s32.totalorder %s30, 0
      %p191 = por %p189, %p190
      %p192 = scmp.ne.s32.totalorder %s180, %s181
      %p193 = scmp.eq.s32.totalorder %s31, 1
      %p194 = por %p192, %p193
      %p196 = scmp.ne.s32.totalorder %s181, %s195
      %p197 = scmp.eq.s32.totalorder %s31, 0
      %p198 = por %p196, %p197
      %s200 = sadd.s32 %s199, 1
      %p203 = scmp.eq.s32.totalorder %s25, 1
      %p204 = scmp.ne.s32.totalorder %s199, %s201
      %p205 = scmp.eq.s32.totalorder %s25, 0
      %p206 = por %p204, %p205
      %p207 = scmp.ne.s32.totalorder %s199, %s201
      %p208 = scmp.eq.s32.totalorder %s30, 1
      %p209 = por %p207, %p208
      %p210 = scmp.ne.s32.totalorder %s201, %s202
      %p211 = scmp.eq.s32.totalorder %s30, 0
      %p212 = por %p210, %p211
      %p213 = scmp.ne.s32.totalorder %s201, %s202
      %p214 = scmp.eq.s32.totalorder %s31, 1
      %p215 = por %p213, %p214
      %p217 = scmp.ne.s32.totalorder %s202, %s216
      %p218 = scmp.eq.s32.totalorder %s31, 0
      %p219 = por %p217, %p218
      %s221 = sadd.s32 %s220, 1
      %p224 = scmp.eq.s32.totalorder %s25, 1
      %p225 = scmp.ne.s32.totalorder %s220, %s222
      %p226 = scmp.eq.s32.totalorder %s25, 0
      %p227 = por %p225, %p226
      %p228 = scmp.ne.s32.totalorder %s220, %s222
      %p229 = scmp.eq.s32.totalorder %s30, 1
      %p230 = por %p228, %p229
      %p231 = scmp.ne.s32.totalorder %s222, %s223
      %p232 = scmp.eq.s32.totalorder %s30, 0
      %p233 = por %p231, %p232
      %p234 = scmp.ne.s32.totalorder %s222, %s223
      %p235 = scmp.eq.s32.totalorder %s31, 1
      %p236 = por %p234, %p235
      %p238 = scmp.ne.s32.totalorder %s223, %s237
      %p239 = scmp.eq.s32.totalorder %s31, 0
      %p240 = por %p238, %p239
      %s242 = sadd.s32 %s241, 1
      %p245 = scmp.eq.s32.totalorder %s25, 1
      %p246 = scmp.ne.s32.totalorder %s241, %s243
      %p247 = scmp.eq.s32.totalorder %s25, 0
      %p248 = por %p246, %p247
      %p249 = scmp.ne.s32.totalorder %s241, %s243
      %p250 = scmp.eq.s32.totalorder %s30, 1
      %p251 = por %p249, %p250
      %p252 = scmp.ne.s32.totalorder %s243, %s244
      %p253 = scmp.eq.s32.totalorder %s30, 0
      %p254 = por %p252, %p253
      %p255 = scmp.ne.s32.totalorder %s243, %s244
      %p256 = scmp.eq.s32.totalorder %s31, 1
      %p257 = por %p255, %p256
      %p259 = scmp.ne.s32.totalorder %s244, %s258
      %p260 = scmp.eq.s32.totalorder %s31, 0
      %p261 = por %p259, %p260
      %s263 = sadd.s32 %s262, 1
      %p266 = scmp.eq.s32.totalorder %s25, 1
      %p267 = scmp.ne.s32.totalorder %s262, %s264
      %p268 = scmp.eq.s32.totalorder %s25, 0
      %p269 = por %p267, %p268
      %p270 = scmp.ne.s32.totalorder %s262, %s264
      %p271 = scmp.eq.s32.totalorder %s30, 1
      %p272 = por %p270, %p271
      %p273 = scmp.ne.s32.totalorder %s264, %s265
      %p274 = scmp.eq.s32.totalorder %s30, 0
      %p275 = por %p273, %p274
      %p276 = scmp.ne.s32.totalorder %s264, %s265
      %p277 = scmp.eq.s32.totalorder %s31, 1
      %p278 = por %p276, %p277
      %p280 = scmp.ne.s32.totalorder %s265, %s279
      %p281 = scmp.eq.s32.totalorder %s31, 0
      %p282 = por %p280, %p281
      %s283 = ssub.s32 %s32, %s44
      %s284 = ssub.s32 %s33, %s40
      %s285 = sor.u32 %s283, %s284
      %p286 = scmp.eq.s32.totalorder %s285, 0
      %s288 = sadd.s32 %s287, 1
      %s289 = scalar_select %p286, %s287, %s288
      %p292 = pneg %p286
      %p293 = scmp.eq.s32.totalorder %s25, 1
      %p294 = por %p292, %p293
      %p295 = scmp.ne.s32.totalorder %s287, %s290
      %p296 = scmp.eq.s32.totalorder %s25, 0
      %p297 = por %p295, %p296
      %p298 = scmp.ne.s32.totalorder %s287, %s290
      %p299 = scmp.eq.s32.totalorder %s30, 1
      %p300 = por %p298, %p299
      %p301 = scmp.ne.s32.totalorder %s290, %s291
      %p302 = scmp.eq.s32.totalorder %s30, 0
      %p303 = por %p301, %p302
      %p304 = scmp.ne.s32.totalorder %s290, %s291
      %p305 = scmp.eq.s32.totalorder %s31, 1
      %p306 = por %p304, %p305
      %p308 = scmp.ne.s32.totalorder %s291, %s307
      %p309 = scmp.eq.s32.totalorder %s31, 0
      %p310 = por %p308, %p309
      %s311 = ssub.s32 %s32, %s44
      %p312 = scmp.eq.s32.totalorder %s311, 0
      %s314 = sadd.s32 %s313, 1
      %s315 = scalar_select %p312, %s313, %s314
      %p318 = pneg %p312
      %p319 = scmp.eq.s32.totalorder %s25, 1
      %p320 = por %p318, %p319
      %p321 = scmp.ne.s32.totalorder %s313, %s316
      %p322 = scmp.eq.s32.totalorder %s25, 0
      %p323 = por %p321, %p322
      %p324 = scmp.ne.s32.totalorder %s313, %s316
      %p325 = scmp.eq.s32.totalorder %s30, 1
      %p326 = por %p324, %p325
      %p327 = scmp.ne.s32.totalorder %s316, %s317
      %p328 = scmp.eq.s32.totalorder %s30, 0
      %p329 = por %p327, %p328
      %p330 = scmp.ne.s32.totalorder %s316, %s317
      %p331 = scmp.eq.s32.totalorder %s31, 1
      %p332 = por %p330, %p331
      %p334 = scmp.ne.s32.totalorder %s317, %s333
      %p335 = scmp.eq.s32.totalorder %s31, 0
      %p336 = por %p334, %p335
      %s337 = ssub.s32 %s32, %s44
      %p338 = scmp.eq.s32.totalorder %s337, 0
      %s340 = sadd.s32 %s339, 1
      %s341 = scalar_select %p338, %s339, %s340
      %p344 = pneg %p338
      %p345 = scmp.eq.s32.totalorder %s25, 1
      %p346 = por %p344, %p345
      %p347 = scmp.ne.s32.totalorder %s339, %s342
      %p348 = scmp.eq.s32.totalorder %s25, 0
      %p349 = por %p347, %p348
      %p350 = scmp.ne.s32.totalorder %s339, %s342
      %p351 = scmp.eq.s32.totalorder %s30, 1
      %p352 = por %p350, %p351
      %p353 = scmp.ne.s32.totalorder %s342, %s343
      %p354 = scmp.eq.s32.totalorder %s30, 0
      %p355 = por %p353, %p354
      %p356 = scmp.ne.s32.totalorder %s342, %s343
      %p357 = scmp.eq.s32.totalorder %s31, 1
      %p358 = por %p356, %p357
      %p360 = scmp.ne.s32.totalorder %s343, %s359
      %p361 = scmp.eq.s32.totalorder %s31, 0
      %p362 = por %p360, %p361
      %s363 = ssub.s32 %s32, %s44
      %p364 = scmp.eq.s32.totalorder %s363, 0
      %s366 = sadd.s32 %s365, 1
      %s367 = scalar_select %p364, %s365, %s366
      %p370 = pneg %p364
      %p371 = scmp.eq.s32.totalorder %s25, 1
      %p372 = por %p370, %p371
      %p373 = scmp.ne.s32.totalorder %s365, %s368
      %p374 = scmp.eq.s32.totalorder %s25, 0
      %p375 = por %p373, %p374
      %p376 = scmp.ne.s32.totalorder %s365, %s368
      %p377 = scmp.eq.s32.totalorder %s30, 1
      %p378 = por %p376, %p377
      %p379 = scmp.ne.s32.totalorder %s368, %s369
      %p380 = scmp.eq.s32.totalorder %s30, 0
      %p381 = por %p379, %p380
      %p382 = scmp.ne.s32.totalorder %s368, %s369
      %p383 = scmp.eq.s32.totalorder %s31, 1
      %p384 = por %p382, %p383
      %p386 = scmp.ne.s32.totalorder %s369, %s385
      %p387 = scmp.eq.s32.totalorder %s31, 0
      %p388 = por %p386, %p387
      %s389 = ssub.s32 %s32, %s44
      %p390 = scmp.eq.s32.totalorder %s389, 0
      %s392 = sadd.s32 %s391, 1
      %s393 = scalar_select %p390, %s391, %s392
      %p396 = pneg %p390
      %p397 = scmp.eq.s32.totalorder %s25, 1
      %p398 = por %p396, %p397
      %p399 = scmp.ne.s32.totalorder %s391, %s394
      %p400 = scmp.eq.s32.totalorder %s25, 0
      %p401 = por %p399, %p400
      %p402 = scmp.ne.s32.totalorder %s391, %s394
      %p403 = scmp.eq.s32.totalorder %s30, 1
      %p404 = por %p402, %p403
      %p405 = scmp.ne.s32.totalorder %s394, %s395
      %p406 = scmp.eq.s32.totalorder %s30, 0
      %p407 = por %p405, %p406
      %p408 = scmp.ne.s32.totalorder %s394, %s395
      %p409 = scmp.eq.s32.totalorder %s31, 1
      %p410 = por %p408, %p409
      %p412 = scmp.ne.s32.totalorder %s395, %s411
      %p413 = scmp.eq.s32.totalorder %s31, 0
      %p414 = por %p412, %p413
      %p415 = scmp.le.s32.totalorder 1, %s25
      %p416 = scmp.lt.s32.totalorder %s25, 3
      %p417 = pnand %p415, %p416
      %p418 = pneg %p417
      // Predicated region
      $region9: #{tpu_custom_call.1} parent=5 // pred_check
        _
      $region10: #{tpu_custom_call.1} parent=5 // pred_check_branch
        %420 = sbr.rel (%p417) target = $region12
      $region11: #{tpu_custom_call.1} parent=5 // pred_region
        %s421 = ssub.s32 %s25, 1
        // Predicated region
        $region13: #{tpu_custom_call.1} parent=11 // pred_check
          %p422 = pneg %p86
        $region14: #{tpu_custom_call.1} parent=11 // pred_check_branch
          %424 = sbr.rel (%p422) target = $region16
        $region15: #{tpu_custom_call.1} parent=11 // pred_region
          _
        $region16: #{tpu_custom_call.1} parent=11 // pred_fallthru
          _
        // Predicated region
        $region17: #{tpu_custom_call.1} parent=11 // pred_check
          %p425 = pneg %p107
        $region18: #{tpu_custom_call.1} parent=11 // pred_check_branch
          %427 = sbr.rel (%p425) target = $region20
        $region19: #{tpu_custom_call.1} parent=11 // pred_region
          _
        $region20: #{tpu_custom_call.1} parent=11 // pred_fallthru
          _
        // Predicated region
        $region21: #{tpu_custom_call.1} parent=11 // pred_check
          %p428 = pneg %p128
        $region22: #{tpu_custom_call.1} parent=11 // pred_check_branch
          %430 = sbr.rel (%p428) target = $region24
        $region23: #{tpu_custom_call.1} parent=11 // pred_region
          _
        $region24: #{tpu_custom_call.1} parent=11 // pred_fallthru
          _
        // Predicated region
        $region25: #{tpu_custom_call.1} parent=11 // pred_check
          %p431 = pneg %p149
        $region26: #{tpu_custom_call.1} parent=11 // pred_check_branch
          %433 = sbr.rel (%p431) target = $region28
        $region27: #{tpu_custom_call.1} parent=11 // pred_region
          _
        $region28: #{tpu_custom_call.1} parent=11 // pred_fallthru
          _
        // Predicated region
        $region29: #{tpu_custom_call.1} parent=11 // pred_check
          %p434 = pneg %p170
        $region30: #{tpu_custom_call.1} parent=11 // pred_check_branch
          %436 = sbr.rel (%p434) target = $region32
        $region31: #{tpu_custom_call.1} parent=11 // pred_region
          _
        $region32: #{tpu_custom_call.1} parent=11 // pred_fallthru
          _
        // Predicated region
        $region33: #{tpu_custom_call.1} parent=11 // pred_check
          %p437 = pneg %p191
        $region34: #{tpu_custom_call.1} parent=11 // pred_check_branch
          %439 = sbr.rel (%p437) target = $region36
        $region35: #{tpu_custom_call.1} parent=11 // pred_region
          _
        $region36: #{tpu_custom_call.1} parent=11 // pred_fallthru
          _
        // Predicated region
        $region37: #{tpu_custom_call.1} parent=11 // pred_check
          %p440 = pneg %p212
        $region38: #{tpu_custom_call.1} parent=11 // pred_check_branch
          %442 = sbr.rel (%p440) target = $region40
        $region39: #{tpu_custom_call.1} parent=11 // pred_region
          _
        $region40: #{tpu_custom_call.1} parent=11 // pred_fallthru
          _
        // Predicated region
        $region41: #{tpu_custom_call.1} parent=11 // pred_check
          %p443 = pneg %p233
        $region42: #{tpu_custom_call.1} parent=11 // pred_check_branch
          %445 = sbr.rel (%p443) target = $region44
        $region43: #{tpu_custom_call.1} parent=11 // pred_region
          _
        $region44: #{tpu_custom_call.1} parent=11 // pred_fallthru
          _
        // Predicated region
        $region45: #{tpu_custom_call.1} parent=11 // pred_check
          %p446 = pneg %p254
        $region46: #{tpu_custom_call.1} parent=11 // pred_check_branch
          %448 = sbr.rel (%p446) target = $region48
        $region47: #{tpu_custom_call.1} parent=11 // pred_region
          _
        $region48: #{tpu_custom_call.1} parent=11 // pred_fallthru
          _
        // Predicated region
        $region49: #{tpu_custom_call.1} parent=11 // pred_check
          %p449 = pneg %p275
        $region50: #{tpu_custom_call.1} parent=11 // pred_check_branch
          %451 = sbr.rel (%p449) target = $region52
        $region51: #{tpu_custom_call.1} parent=11 // pred_region
          _
        $region52: #{tpu_custom_call.1} parent=11 // pred_fallthru
          _
      $region12: #{tpu_custom_call.1} parent=5 // pred_fallthru
        _
      %p452 = scmp.lt.s32.totalorder %s25, 2
      // Predicated region
      $region53: #{tpu_custom_call.1} parent=5 // pred_check
        %p453 = pneg %p452
      $region54: #{tpu_custom_call.1} parent=5 // pred_check_branch
        %455 = sbr.rel (%p453) target = $region56
      $region55: #{tpu_custom_call.1} parent=5 // pred_region
        // Predicated region
        $region57: #{tpu_custom_call.1} parent=55 // pred_check
          %p456 = pneg %p59
        $region58: #{tpu_custom_call.1} parent=55 // pred_check_branch
          %458 = sbr.rel (%p456) target = $region60
        $region59: #{tpu_custom_call.1} parent=55 // pred_region
          %s459 = smul.u32 2, %s33
          %p460 = scmp.lt.s32.totalorder %s32, 1
          %s461 = scalar_select %p460, %s32, 1
          %p462 = scmp.lt.s32.totalorder %s459, 1
          %s463 = scalar_select %p462, %s459, 1
          %s464 = smul.addr %s461, 2
          %s465 = sadd.s32 %s463, %s464
          %s466 = smul.addr %s465, 4
          %s467 = scalar_lea.vmem %s0, %s466
          %s468 = smul.u32 2, %s33
        $region60: #{tpu_custom_call.1} parent=55 // pred_fallthru
          _
      $region56: #{tpu_custom_call.1} parent=5 // pred_fallthru
        _
      %p469 = scmp.le.s32.totalorder 1, %s25
      %p470 = scmp.lt.s32.totalorder %s25, 3
      %p471 = pnand %p469, %p470
      %p472 = pneg %p471
      // Predicated region
      $region61: #{tpu_custom_call.1} parent=5 // pred_check
        _
      $region62: #{tpu_custom_call.1} parent=5 // pred_check_branch
        %474 = sbr.rel (%p471) target = $region64
      $region63: #{tpu_custom_call.1} parent=5 // pred_region
        %s475 = ssub.s32 %s25, 1
        %s476 = smul.u32 2, %s35
        %p477 = scmp.lt.s32.totalorder %s34, 1
        %s478 = scalar_select %p477, %s34, 1
        %p479 = scmp.lt.s32.totalorder %s476, 1
        %s480 = scalar_select %p479, %s476, 1
        %s481 = smul.addr %s478, 2
        %s482 = sadd.s32 %s480, %s481
        %s483 = smul.addr %s482, 4
        %s484 = scalar_lea.vmem %s0, %s483
        %p485 = pneg %p65
        %p486 = pneg %p62
        %p487 = pneg %p86
        %p488 = pneg %p83
        %p489 = pneg %p107
        %p490 = pneg %p104
        %p491 = pneg %p128
        %p492 = pneg %p125
        %p493 = pneg %p149
        %p494 = pneg %p146
        %p495 = pneg %p170
        %p496 = pneg %p167
        %p497 = pneg %p191
        %p498 = pneg %p188
        %p499 = pneg %p212
        %p500 = pneg %p209
        %p501 = pneg %p233
        %p502 = pneg %p230
        %p503 = pneg %p254
        %p504 = pneg %p251
        %p505 = pneg %p275
        %p506 = pneg %p272
        %p507 = pneg %p303
        %p508 = pneg %p300
        %s509 = sand.u32 %s290, 1
        %s510 = scalar_lea.sflag [#allocation5], %s509
        %s511 = sand.u32 %s290, 1
        %s512 = smul.addr %s511, 8
        %s513 = scalar_lea.vmem [#allocation4], %s512
        %p514 = pneg %p329
        %p515 = pneg %p326
        %p516 = scmp.lt.s32.totalorder %s34, 1
        %s517 = scalar_select %p516, %s34, 1
        %s518 = smul.addr %s517, 2
        %s519 = smul.addr %s518, 8
        %s520 = scalar_lea.vmem %s12, %s519
        %p521 = pneg %p355
        %p522 = pneg %p352
        %p523 = scmp.lt.s32.totalorder %s34, 1
        %s524 = scalar_select %p523, %s34, 1
        %s525 = smul.addr %s524, 8
        %s526 = smul.addr %s525, 8
        %s527 = scalar_lea.vmem %s13, %s526
        %p528 = pneg %p381
        %p529 = pneg %p378
        %p530 = scmp.lt.s32.totalorder %s34, 1
        %s531 = scalar_select %p530, %s34, 1
        %s532 = smul.addr %s531, 2
        %s533 = smul.addr %s532, 8
        %s534 = scalar_lea.vmem %s14, %s533
        %p535 = pneg %p407
        %p536 = pneg %p404
        %p537 = scmp.lt.s32.totalorder %s34, 1
        %s538 = scalar_select %p537, %s34, 1
        %s539 = smul.addr %s538, 8
        %s540 = smul.addr %s539, 8
        %s541 = scalar_lea.vmem %s15, %s540
        %s542 = smul.u32 2, %s35
        %p543 = scmp.lt.s32.totalorder %s34, 1
        %s544 = scalar_select %p543, %s34, 1
        %p545 = scmp.lt.s32.totalorder %s542, 1
        %s546 = scalar_select %p545, %s542, 1
        %s547 = smul.addr %s544, 2
        %s548 = sadd.s32 %s546, %s547
        %s549 = smul.addr %s548, 4
        %s550 = scalar_lea.vmem %s0, %s549
        %s551 = smul.u32 2, %s35
        %s552 = smul.u32 2, %s35
        %p553 = scmp.lt.s32.totalorder %s34, 1
        %s554 = scalar_select %p553, %s34, 1
        %s555 = smul.addr %s554, 2
        %s556 = smul.addr %s555, 8
        %s557 = scalar_lea.vmem %s12, %s556
        %p558 = scmp.lt.s32.totalorder %s34, 1
        %s559 = scalar_select %p558, %s34, 1
        %s560 = smul.addr %s559, 8
        %s561 = smul.addr %s560, 8
        %s562 = scalar_lea.vmem %s13, %s561
        %p563 = scmp.lt.s32.totalorder %s34, 1
        %s564 = scalar_select %p563, %s34, 1
        %s565 = smul.addr %s564, 2
        %s566 = smul.addr %s565, 8
        %s567 = scalar_lea.vmem %s14, %s566
        %p568 = scmp.lt.s32.totalorder %s34, 1
        %s569 = scalar_select %p568, %s34, 1
        %s570 = smul.addr %s569, 8
        %s571 = smul.addr %s570, 8
        %s572 = scalar_lea.vmem %s15, %s571
        %v573 = vld [vmem:[%s550] sm:$0xff]
        %v574 = vld [vmem:[%s1] sm:$0xf]
        %v575 = vld [vmem:[%s2] sm:$0xf]
        %577 = vset.pattern.permute.xlu0 0
        %578 = vperm.xlu0 %577, %v575
        %v579 = vpop.permute.xlu0 %578
        %v582 = vcombine.high %v573, %v573
        %vm583 = vcmask 31744
        %v585 = vsel %vm583, %v574, 0
        %vm587 = vcmask 1043456
        %v588 = vsel %vm587, %v573, 0
        %v590 = vsel %vm587, %v582, 0
        %592 = vmatprep.subr.mxu0 %v590
        %593 = vmatpush1.msra.mxu0 %v588
        %594 = vmatprep.subr.mxu0 0.0
        %595 = vmatpush1.msra.mxu0 0.0
        %596 = vmatprep.subr.mxu0 0.0
        %597 = vmatpush1.msra.mxu0 0.0
        %598 = vmatprep.subr.mxu0 0.0
        %599 = vmatpush1.msra.mxu0 0.0
        %600 = vmatprep.subr.mxu0 0.0
        %601 = vmatpush1.msra.mxu0 0.0
        %602 = vmatprep.subr.mxu0 0.0
        %603 = vmatpush1.msra.mxu0 0.0
        %604 = vmatprep.subr.mxu0 0.0
        %605 = vmatpush1.msra.mxu0 0.0
        %606 = vmatprep.subr.mxu0 0.0
        %607 = vmatpush1.msra.mxu0 0.0
        %608 = vmatprep.subr.mxu0 0.0
        %609 = vmatpush1.msra.mxu0 0.0
        %610 = vmatprep.subr.mxu0 0.0
        %611 = vmatpush1.msra.mxu0 0.0
        %612 = vmatprep.subr.mxu0 0.0
        %613 = vmatpush1.msra.mxu0 0.0
        %614 = vmatprep.subr.mxu0 0.0
        %615 = vmatpush1.msra.mxu0 0.0
        %616 = vmatprep.subr.mxu0 0.0
        %617 = vmatpush1.msra.mxu0 0.0
        %618 = vmatprep.subr.mxu0 0.0
        %619 = vmatpush1.msra.mxu0 0.0
        %620 = vmatprep.subr.mxu0 0.0
        %621 = vmatpush1.msra.mxu0 0.0
        %622 = vmatprep.subr.mxu0 0.0
        %623 = vmatpush1.msra.mxu0 0.0
        %624 = vmatprep.subr.mxu0 0.0
        %625 = vmatpush1.msra.mxu0 0.0
        %626 = vmatprep.subr.mxu0 0.0
        %627 = vmatpush1.msra.mxu0 0.0
        %628 = vmatprep.subr.mxu0 0.0
        %629 = vmatpush1.msra.mxu0 0.0
        %630 = vmatprep.subr.mxu0 0.0
        %631 = vmatpush1.msra.mxu0 0.0
        %632 = vmatprep.subr.mxu0 0.0
        %633 = vmatpush1.msra.mxu0 0.0
        %634 = vmatprep.subr.mxu0 0.0
        %635 = vmatpush1.msra.mxu0 0.0
        %636 = vmatprep.subr.mxu0 0.0
        %637 = vmatpush1.msra.mxu0 0.0
        %638 = vmatprep.subr.mxu0 0.0
        %639 = vmatpush1.msra.mxu0 0.0
        %640 = vmatprep.subr.mxu0 0.0
        %641 = vmatpush1.msra.mxu0 0.0
        %642 = vmatprep.subr.mxu0 0.0
        %643 = vmatpush1.msra.mxu0 0.0
        %644 = vmatprep.subr.mxu0 0.0
        %645 = vmatpush1.msra.mxu0 0.0
        %646 = vmatprep.subr.mxu0 0.0
        %647 = vmatpush1.msra.mxu0 0.0
        %648 = vmatprep.subr.mxu0 0.0
        %649 = vmatpush1.msra.mxu0 0.0
        %650 = vmatprep.subr.mxu0 0.0
        %651 = vmatpush1.msra.mxu0 0.0
        %652 = vmatprep.subr.mxu0 0.0
        %653 = vmatpush1.msra.mxu0 0.0
        %654 = vmatprep.subr.mxu0 0.0
        %655 = vmatpush1.msra.mxu0 0.0
        %656 = vmatprep.mubr.f32.mxu0 0.0
        %657 = vmatmul.mubr.f32.gmra.mrb[0].mxu0 %v585
        %v658 = vpop.f32.mrb[0].mxu0
        %v659 = vadd.f32 %v579, %v658
        %v660 = vpop.f32.mrb[0].mxu0
        %v661 = vadd.f32 %v579, %v660
        %662 = vdwg.mxu0
        %v663 = vtanh.pop %v659
        %v664 = vtanh.pop %v661
        %v667 = vcombine.low %v663, %v664
        %669 = vst [vmem:[%s513] sm:$0xff] %v667
        %p670 = scmp.eq.s32.totalorder %s35, 0
        // Predicated region
        $region65: #{tpu_custom_call.1} parent=63 // pred_check
          %p671 = pneg %p670
        $region66: #{tpu_custom_call.1} parent=63 // pred_check_branch
          %673 = sbr.rel (%p671) target = $region68
        $region67: #{tpu_custom_call.1} parent=63 // pred_region
          %vm674 = vcmask 3072
          %675 = vst.msk [vmem:[#allocation2] sm:$0xf] %vm674, 0.0
          %676 = vst.msk [vmem:[#allocation3] sm:$0xf] %vm674, 0.0
        $region68: #{tpu_custom_call.1} parent=63 // pred_fallthru
          _
        %v677 = vld [vmem:[#allocation2] sm:$0xf]
        %v679 = vsel %vm587, %v573, 0.0
        %v680 = vsel %vm587, %v582, 0.0
        %v681 = vadd.f32 %v679, %v680
        %682 = vadd.xlane.f32.xlu0 %v681
        %v683 = vpop.xlane.xlu0 %682
        %v684 = vadd.f32 %v677, %v683
        %vm685 = vcmask 3072
        %686 = vst.msk [vmem:[#allocation2] sm:$0xf] %vm685, %v684
        %v687 = vld [vmem:[#allocation3] sm:$0xf]
        %v688 = vsel %vm587, %v663, 0.0
        %v689 = vsel %vm587, %v664, 0.0
        %v690 = vadd.f32 %v688, %v689
        %691 = vadd.xlane.f32.xlu0 %v690
        %v692 = vpop.xlane.xlu0 %691
        %v693 = vadd.f32 %v687, %v692
        %694 = vst.msk [vmem:[#allocation3] sm:$0xf] %vm685, %v693
        // Predicated region
        $region69: #{tpu_custom_call.1} parent=63 // pred_check
          %p695 = pneg %p670
        $region70: #{tpu_custom_call.1} parent=63 // pred_check_branch
          %697 = sbr.rel (%p695) target = $region72
        $region71: #{tpu_custom_call.1} parent=63 // pred_region
          %v698 = vld [vmem:[#allocation2] sm:$0xf]
          %v699 = vmul.f32 %v698, 0.00390625
          %v700 = vld [vmem:[#allocation3] sm:$0xf]
          %v701 = vmul.f32 %v700, 0.00390625
          %v702 = vld [vmem:[%s3] sm:$0xff]
          %v703 = vld [vmem:[%s3 + $0x8] sm:$0xff]
          %v704 = vld [vmem:[%s3 + $0x10] sm:$0xff]
          %v705 = vld [vmem:[%s3 + $0x18] sm:$0xff]
          %v706 = vld [vmem:[%s3 + $0x20] sm:$0xff]
          %v707 = vld [vmem:[%s3 + $0x28] sm:$0xff]
          %v708 = vld [vmem:[%s3 + $0x30] sm:$0xff]
          %v709 = vld [vmem:[%s3 + $0x38] sm:$0xff]
          %v710 = vld [vmem:[%s4] sm:$0xff]
          %v711 = vld [vmem:[%s4 + $0x8] sm:$0xff]
          %v712 = vld [vmem:[%s4 + $0x10] sm:$0xff]
          %v713 = vld [vmem:[%s4 + $0x18] sm:$0xff]
          %v714 = vld [vmem:[%s4 + $0x20] sm:$0xff]
          %v715 = vld [vmem:[%s4 + $0x28] sm:$0xff]
          %v716 = vld [vmem:[%s4 + $0x30] sm:$0xff]
          %v717 = vld [vmem:[%s4 + $0x38] sm:$0xff]
          %v719 = vsel %vm583, %v702, 0
          %v722 = vsel %vm583, %v703, 0
          %v725 = vsel %vm583, %v704, 0
          %v728 = vsel %vm583, %v705, 0
          %v731 = vsel %vm583, %v706, 0
          %v734 = vsel %vm583, %v707, 0
          %v737 = vsel %vm583, %v708, 0
          %v740 = vsel %vm583, %v709, 0
          %v743 = vsel %vm587, %v699, 0
          %745 = vmatprep.subr.mxu0 0.0
          %746 = vmatpush1.msra.mxu0 %v743
          %747 = vmatprep.subr.mxu0 0.0
          %748 = vmatpush1.msra.mxu0 0.0
          %749 = vmatprep.subr.mxu0 0.0
          %750 = vmatpush1.msra.mxu0 0.0
          %751 = vmatprep.subr.mxu0 0.0
          %752 = vmatpush1.msra.mxu0 0.0
          %753 = vmatprep.subr.mxu0 0.0
          %754 = vmatpush1.msra.mxu0 0.0
          %755 = vmatprep.subr.mxu0 0.0
          %756 = vmatpush1.msra.mxu0 0.0
          %757 = vmatprep.subr.mxu0 0.0
          %758 = vmatpush1.msra.mxu0 0.0
          %759 = vmatprep.subr.mxu0 0.0
          %760 = vmatpush1.msra.mxu0 0.0
          %761 = vmatprep.subr.mxu0 0.0
          %762 = vmatpush1.msra.mxu0 0.0
          %763 = vmatprep.subr.mxu0 0.0
          %764 = vmatpush1.msra.mxu0 0.0
          %765 = vmatprep.subr.mxu0 0.0
          %766 = vmatpush1.msra.mxu0 0.0
          %767 = vmatprep.subr.mxu0 0.0
          %768 = vmatpush1.msra.mxu0 0.0
          %769 = vmatprep.subr.mxu0 0.0
          %770 = vmatpush1.msra.mxu0 0.0
          %771 = vmatprep.subr.mxu0 0.0
          %772 = vmatpush1.msra.mxu0 0.0
          %773 = vmatprep.subr.mxu0 0.0
          %774 = vmatpush1.msra.mxu0 0.0
          %775 = vmatprep.subr.mxu0 0.0
          %776 = vmatpush1.msra.mxu0 0.0
          %777 = vmatprep.subr.mxu0 0.0
          %778 = vmatpush1.msra.mxu0 0.0
          %779 = vmatprep.subr.mxu0 0.0
          %780 = vmatpush1.msra.mxu0 0.0
          %781 = vmatprep.subr.mxu0 0.0
          %782 = vmatpush1.msra.mxu0 0.0
          %783 = vmatprep.subr.mxu0 0.0
          %784 = vmatpush1.msra.mxu0 0.0
          %785 = vmatprep.subr.mxu0 0.0
          %786 = vmatpush1.msra.mxu0 0.0
          %787 = vmatprep.subr.mxu0 0.0
          %788 = vmatpush1.msra.mxu0 0.0
          %789 = vmatprep.subr.mxu0 0.0
          %790 = vmatpush1.msra.mxu0 0.0
          %791 = vmatprep.subr.mxu0 0.0
          %792 = vmatpush1.msra.mxu0 0.0
          %793 = vmatprep.subr.mxu0 0.0
          %794 = vmatpush1.msra.mxu0 0.0
          %795 = vmatprep.subr.mxu0 0.0
          %796 = vmatpush1.msra.mxu0 0.0
          %797 = vmatprep.subr.mxu0 0.0
          %798 = vmatpush1.msra.mxu0 0.0
          %799 = vmatprep.subr.mxu0 0.0
          %800 = vmatpush1.msra.mxu0 0.0
          %801 = vmatprep.subr.mxu0 0.0
          %802 = vmatpush1.msra.mxu0 0.0
          %803 = vmatprep.subr.mxu0 0.0
          %804 = vmatpush1.msra.mxu0 0.0
          %805 = vmatprep.subr.mxu0 0.0
          %806 = vmatpush1.msra.mxu0 0.0
          %807 = vmatprep.subr.mxu0 0.0
          %808 = vmatpush1.msra.mxu0 0.0
          %809 = vmatprep.mubr.f32.mxu0 0.0
          %810 = vmatmul.mubr.f32.gmra.mrb[0].mxu0 %v719
          %v811 = vpop.f32.mrb[0].mxu0
          %v812 = vadd.f32 %v710, %v811
          %v813 = vpop.f32.mrb[0].mxu0
          %814 = vmatprep.mubr.f32.mxu0 0.0
          %815 = vmatmul.mubr.f32.gmra.mrb[0].mxu0 %v722
          %v816 = vpop.f32.mrb[0].mxu0
          %v817 = vadd.f32 %v711, %v816
          %v818 = vpop.f32.mrb[0].mxu0
          %819 = vmatprep.mubr.f32.mxu0 0.0
          %820 = vmatmul.mubr.f32.gmra.mrb[0].mxu0 %v725
          %v821 = vpop.f32.mrb[0].mxu0
          %v822 = vadd.f32 %v712, %v821
          %v823 = vpop.f32.mrb[0].mxu0
          %824 = vmatprep.mubr.f32.mxu0 0.0
          %825 = vmatmul.mubr.f32.gmra.mrb[0].mxu0 %v728
          %v826 = vpop.f32.mrb[0].mxu0
          %v827 = vadd.f32 %v713, %v826
          %v828 = vpop.f32.mrb[0].mxu0
          %829 = vmatprep.mubr.f32.mxu0 0.0
          %830 = vmatmul.mubr.f32.gmra.mrb[0].mxu0 %v731
          %v831 = vpop.f32.mrb[0].mxu0
          %v832 = vadd.f32 %v714, %v831
          %v833 = vpop.f32.mrb[0].mxu0
          %834 = vmatprep.mubr.f32.mxu0 0.0
          %835 = vmatmul.mubr.f32.gmra.mrb[0].mxu0 %v734
          %v836 = vpop.f32.mrb[0].mxu0
          %v837 = vadd.f32 %v715, %v836
          %v838 = vpop.f32.mrb[0].mxu0
          %839 = vmatprep.mubr.f32.mxu0 0.0
          %840 = vmatmul.mubr.f32.gmra.mrb[0].mxu0 %v737
          %v841 = vpop.f32.mrb[0].mxu0
          %v842 = vadd.f32 %v716, %v841
          %v843 = vpop.f32.mrb[0].mxu0
          %844 = vmatprep.mubr.f32.mxu0 0.0
          %845 = vmatmul.mubr.f32.gmra.mrb[0].mxu0 %v740
          %v846 = vpop.f32.mrb[0].mxu0
          %v847 = vadd.f32 %v717, %v846
          %v848 = vpop.f32.mrb[0].mxu0
          %849 = vdwg.mxu0
          %v850 = vmax.f32 %v812, 0.0
          %v851 = vmax.f32 %v817, 0.0
          %v852 = vmax.f32 %v822, 0.0
          %v853 = vmax.f32 %v827, 0.0
          %v854 = vmax.f32 %v832, 0.0
          %v855 = vmax.f32 %v837, 0.0
          %v856 = vmax.f32 %v842, 0.0
          %v857 = vmax.f32 %v847, 0.0
          %v858 = vld [vmem:[%s5] sm:$0xff]
          %v859 = vld [vmem:[%s5 + $0x8] sm:$0xff]
          %v860 = vld [vmem:[%s6] sm:$0xff]
          %v861 = vld [vmem:[%s6 + $0x8] sm:$0xff]
          %vm862 = vcmask 523264
          %v864 = vsel %vm862, %v858, 0
          %v867 = vsel %vm862, %v859, 0
          %869 = vmatprep.subr.mxu0 0.0
          %870 = vmatpush1.msra.mxu0 %v850
          %871 = vmatprep.subr.mxu0 0.0
          %872 = vmatpush1.msra.mxu0 %v851
          %873 = vmatprep.subr.mxu0 0.0
          %874 = vmatpush1.msra.mxu0 %v852
          %875 = vmatprep.subr.mxu0 0.0
          %876 = vmatpush1.msra.mxu0 %v853
          %877 = vmatprep.subr.mxu0 0.0
          %878 = vmatpush1.msra.mxu0 %v854
          %879 = vmatprep.subr.mxu0 0.0
          %880 = vmatpush1.msra.mxu0 %v855
          %881 = vmatprep.subr.mxu0 0.0
          %882 = vmatpush1.msra.mxu0 %v856
          %883 = vmatprep.subr.mxu0 0.0
          %884 = vmatpush1.msra.mxu0 %v857
          %885 = vmatprep.subr.mxu0 0.0
          %886 = vmatpush1.msra.mxu0 0.0
          %887 = vmatprep.subr.mxu0 0.0
          %888 = vmatpush1.msra.mxu0 0.0
          %889 = vmatprep.subr.mxu0 0.0
          %890 = vmatpush1.msra.mxu0 0.0
          %891 = vmatprep.subr.mxu0 0.0
          %892 = vmatpush1.msra.mxu0 0.0
          %893 = vmatprep.subr.mxu0 0.0
          %894 = vmatpush1.msra.mxu0 0.0
          %895 = vmatprep.subr.mxu0 0.0
          %896 = vmatpush1.msra.mxu0 0.0
          %897 = vmatprep.subr.mxu0 0.0
          %898 = vmatpush1.msra.mxu0 0.0
          %899 = vmatprep.subr.mxu0 0.0
          %900 = vmatpush1.msra.mxu0 0.0
          %901 = vmatprep.subr.mxu0 0.0
          %902 = vmatpush1.msra.mxu0 0.0
          %903 = vmatprep.subr.mxu0 0.0
          %904 = vmatpush1.msra.mxu0 0.0
          %905 = vmatprep.subr.mxu0 0.0
          %906 = vmatpush1.msra.mxu0 0.0
          %907 = vmatprep.subr.mxu0 0.0
          %908 = vmatpush1.msra.mxu0 0.0
          %909 = vmatprep.subr.mxu0 0.0
          %910 = vmatpush1.msra.mxu0 0.0
          %911 = vmatprep.subr.mxu0 0.0
          %912 = vmatpush1.msra.mxu0 0.0
          %913 = vmatprep.subr.mxu0 0.0
          %914 = vmatpush1.msra.mxu0 0.0
          %915 = vmatprep.subr.mxu0 0.0
          %916 = vmatpush1.msra.mxu0 0.0
          %917 = vmatprep.subr.mxu0 0.0
          %918 = vmatpush1.msra.mxu0 0.0
          %919 = vmatprep.subr.mxu0 0.0
          %920 = vmatpush1.msra.mxu0 0.0
          %921 = vmatprep.subr.mxu0 0.0
          %922 = vmatpush1.msra.mxu0 0.0
          %923 = vmatprep.subr.mxu0 0.0
          %924 = vmatpush1.msra.mxu0 0.0
          %925 = vmatprep.subr.mxu0 0.0
          %926 = vmatpush1.msra.mxu0 0.0
          %927 = vmatprep.subr.mxu0 0.0
          %928 = vmatpush1.msra.mxu0 0.0
          %929 = vmatprep.subr.mxu0 0.0
          %930 = vmatpush1.msra.mxu0 0.0
          %931 = vmatprep.subr.mxu0 0.0
          %932 = vmatpush1.msra.mxu0 0.0
          %933 = vmatprep.mubr.f32.mxu0 0.0
          %934 = vmatmul.mubr.f32.gmra.mrb[0].mxu0 %v864
          %v935 = vpop.f32.mrb[0].mxu0
          %v936 = vadd.f32 %v860, %v935
          %v937 = vpop.f32.mrb[0].mxu0
          %938 = vmatprep.mubr.f32.mxu0 0.0
          %939 = vmatmul.mubr.f32.gmra.mrb[0].mxu0 %v867
          %v940 = vpop.f32.mrb[0].mxu0
          %v941 = vadd.f32 %v861, %v940
          %v942 = vpop.f32.mrb[0].mxu0
          %943 = vdwg.mxu0
          %v944 = vld [vmem:[%s7] sm:$0xff]
          %v945 = vld [vmem:[%s7 + $0x8] sm:$0xff]
          %v946 = vld [vmem:[%s7 + $0x10] sm:$0xff]
          %v947 = vld [vmem:[%s7 + $0x18] sm:$0xff]
          %v948 = vld [vmem:[%s7 + $0x20] sm:$0xff]
          %v949 = vld [vmem:[%s7 + $0x28] sm:$0xff]
          %v950 = vld [vmem:[%s7 + $0x30] sm:$0xff]
          %v951 = vld [vmem:[%s7 + $0x38] sm:$0xff]
          %v952 = vld [vmem:[%s8] sm:$0xff]
          %v953 = vld [vmem:[%s8 + $0x8] sm:$0xff]
          %v954 = vld [vmem:[%s8 + $0x10] sm:$0xff]
          %v955 = vld [vmem:[%s8 + $0x18] sm:$0xff]
          %v956 = vld [vmem:[%s8 + $0x20] sm:$0xff]
          %v957 = vld [vmem:[%s8 + $0x28] sm:$0xff]
          %v958 = vld [vmem:[%s8 + $0x30] sm:$0xff]
          %v959 = vld [vmem:[%s8 + $0x38] sm:$0xff]
          %v961 = vsel %vm583, %v944, 0
          %v964 = vsel %vm583, %v945, 0
          %v967 = vsel %vm583, %v946, 0
          %v970 = vsel %vm583, %v947, 0
          %v973 = vsel %vm583, %v948, 0
          %v976 = vsel %vm583, %v949, 0
          %v979 = vsel %vm583, %v950, 0
          %v982 = vsel %vm583, %v951, 0
          %v985 = vsel %vm587, %v701, 0
          %987 = vmatprep.subr.mxu0 0.0
          %988 = vmatpush1.msra.mxu0 %v985
          %989 = vmatprep.subr.mxu0 0.0
          %990 = vmatpush1.msra.mxu0 0.0
          %991 = vmatprep.subr.mxu0 0.0
          %992 = vmatpush1.msra.mxu0 0.0
          %993 = vmatprep.subr.mxu0 0.0
          %994 = vmatpush1.msra.mxu0 0.0
          %995 = vmatprep.subr.mxu0 0.0
          %996 = vmatpush1.msra.mxu0 0.0
          %997 = vmatprep.subr.mxu0 0.0
          %998 = vmatpush1.msra.mxu0 0.0
          %999 = vmatprep.subr.mxu0 0.0
          %1000 = vmatpush1.msra.mxu0 0.0
          %1001 = vmatprep.subr.mxu0 0.0
          %1002 = vmatpush1.msra.mxu0 0.0
          %1003 = vmatprep.subr.mxu0 0.0
          %1004 = vmatpush1.msra.mxu0 0.0
          %1005 = vmatprep.subr.mxu0 0.0
          %1006 = vmatpush1.msra.mxu0 0.0
          %1007 = vmatprep.subr.mxu0 0.0
          %1008 = vmatpush1.msra.mxu0 0.0
          %1009 = vmatprep.subr.mxu0 0.0
          %1010 = vmatpush1.msra.mxu0 0.0
          %1011 = vmatprep.subr.mxu0 0.0
          %1012 = vmatpush1.msra.mxu0 0.0
          %1013 = vmatprep.subr.mxu0 0.0
          %1014 = vmatpush1.msra.mxu0 0.0
          %1015 = vmatprep.subr.mxu0 0.0
          %1016 = vmatpush1.msra.mxu0 0.0
          %1017 = vmatprep.subr.mxu0 0.0
          %1018 = vmatpush1.msra.mxu0 0.0
          %1019 = vmatprep.subr.mxu0 0.0
          %1020 = vmatpush1.msra.mxu0 0.0
          %1021 = vmatprep.subr.mxu0 0.0
          %1022 = vmatpush1.msra.mxu0 0.0
          %1023 = vmatprep.subr.mxu0 0.0
          %1024 = vmatpush1.msra.mxu0 0.0
          %1025 = vmatprep.subr.mxu0 0.0
          %1026 = vmatpush1.msra.mxu0 0.0
          %1027 = vmatprep.subr.mxu0 0.0
          %1028 = vmatpush1.msra.mxu0 0.0
          %1029 = vmatprep.subr.mxu0 0.0
          %1030 = vmatpush1.msra.mxu0 0.0
          %1031 = vmatprep.subr.mxu0 0.0
          %1032 = vmatpush1.msra.mxu0 0.0
          %1033 = vmatprep.subr.mxu0 0.0
          %1034 = vmatpush1.msra.mxu0 0.0
          %1035 = vmatprep.subr.mxu0 0.0
          %1036 = vmatpush1.msra.mxu0 0.0
          %1037 = vmatprep.subr.mxu0 0.0
          %1038 = vmatpush1.msra.mxu0 0.0
          %1039 = vmatprep.subr.mxu0 0.0
          %1040 = vmatpush1.msra.mxu0 0.0
          %1041 = vmatprep.subr.mxu0 0.0
          %1042 = vmatpush1.msra.mxu0 0.0
          %1043 = vmatprep.subr.mxu0 0.0
          %1044 = vmatpush1.msra.mxu0 0.0
          %1045 = vmatprep.subr.mxu0 0.0
          %1046 = vmatpush1.msra.mxu0 0.0
          %1047 = vmatprep.subr.mxu0 0.0
          %1048 = vmatpush1.msra.mxu0 0.0
          %1049 = vmatprep.subr.mxu0 0.0
          %1050 = vmatpush1.msra.mxu0 0.0
          %1051 = vmatprep.mubr.f32.mxu0 0.0
          %1052 = vmatmul.mubr.f32.gmra.mrb[0].mxu0 %v961
          %v1053 = vpop.f32.mrb[0].mxu0
          %v1054 = vadd.f32 %v952, %v1053
          %v1055 = vpop.f32.mrb[0].mxu0
          %1056 = vmatprep.mubr.f32.mxu0 0.0
          %1057 = vmatmul.mubr.f32.gmra.mrb[0].mxu0 %v964
          %v1058 = vpop.f32.mrb[0].mxu0
          %v1059 = vadd.f32 %v953, %v1058
          %v1060 = vpop.f32.mrb[0].mxu0
          %1061 = vmatprep.mubr.f32.mxu0 0.0
          %1062 = vmatmul.mubr.f32.gmra.mrb[0].mxu0 %v967
          %v1063 = vpop.f32.mrb[0].mxu0
          %v1064 = vadd.f32 %v954, %v1063
          %v1065 = vpop.f32.mrb[0].mxu0
          %1066 = vmatprep.mubr.f32.mxu0 0.0
          %1067 = vmatmul.mubr.f32.gmra.mrb[0].mxu0 %v970
          %v1068 = vpop.f32.mrb[0].mxu0
          %v1069 = vadd.f32 %v955, %v1068
          %v1070 = vpop.f32.mrb[0].mxu0
          %1071 = vmatprep.mubr.f32.mxu0 0.0
          %1072 = vmatmul.mubr.f32.gmra.mrb[0].mxu0 %v973
          %v1073 = vpop.f32.mrb[0].mxu0
          %v1074 = vadd.f32 %v956, %v1073
          %v1075 = vpop.f32.mrb[0].mxu0
          %1076 = vmatprep.mubr.f32.mxu0 0.0
          %1077 = vmatmul.mubr.f32.gmra.mrb[0].mxu0 %v976
          %v1078 = vpop.f32.mrb[0].mxu0
          %v1079 = vadd.f32 %v957, %v1078
          %v1080 = vpop.f32.mrb[0].mxu0
          %1081 = vmatprep.mubr.f32.mxu0 0.0
          %1082 = vmatmul.mubr.f32.gmra.mrb[0].mxu0 %v979
          %v1083 = vpop.f32.mrb[0].mxu0
          %v1084 = vadd.f32 %v958, %v1083
          %v1085 = vpop.f32.mrb[0].mxu0
          %1086 = vmatprep.mubr.f32.mxu0 0.0
          %1087 = vmatmul.mubr.f32.gmra.mrb[0].mxu0 %v982
          %v1088 = vpop.f32.mrb[0].mxu0
          %v1089 = vadd.f32 %v959, %v1088
          %v1090 = vpop.f32.mrb[0].mxu0
          %1091 = vdwg.mxu0
          %v1092 = vmax.f32 %v1054, 0.0
          %v1093 = vmax.f32 %v1059, 0.0
          %v1094 = vmax.f32 %v1064, 0.0
          %v1095 = vmax.f32 %v1069, 0.0
          %v1096 = vmax.f32 %v1074, 0.0
          %v1097 = vmax.f32 %v1079, 0.0
          %v1098 = vmax.f32 %v1084, 0.0
          %v1099 = vmax.f32 %v1089, 0.0
          %v1100 = vld [vmem:[%s9] sm:$0xff]
          %v1101 = vld [vmem:[%s9 + $0x8] sm:$0xff]
          %v1102 = vld [vmem:[%s10] sm:$0xff]
          %v1103 = vld [vmem:[%s10 + $0x8] sm:$0xff]
          %v1105 = vsel %vm862, %v1100, 0
          %v1108 = vsel %vm862, %v1101, 0
          %1110 = vmatprep.subr.mxu0 0.0
          %1111 = vmatpush1.msra.mxu0 %v1092
          %1112 = vmatprep.subr.mxu0 0.0
          %1113 = vmatpush1.msra.mxu0 %v1093
          %1114 = vmatprep.subr.mxu0 0.0
          %1115 = vmatpush1.msra.mxu0 %v1094
          %1116 = vmatprep.subr.mxu0 0.0
          %1117 = vmatpush1.msra.mxu0 %v1095
          %1118 = vmatprep.subr.mxu0 0.0
          %1119 = vmatpush1.msra.mxu0 %v1096
          %1120 = vmatprep.subr.mxu0 0.0
          %1121 = vmatpush1.msra.mxu0 %v1097
          %1122 = vmatprep.subr.mxu0 0.0
          %1123 = vmatpush1.msra.mxu0 %v1098
          %1124 = vmatprep.subr.mxu0 0.0
          %1125 = vmatpush1.msra.mxu0 %v1099
          %1126 = vmatprep.subr.mxu0 0.0
          %1127 = vmatpush1.msra.mxu0 0.0
          %1128 = vmatprep.subr.mxu0 0.0
          %1129 = vmatpush1.msra.mxu0 0.0
          %1130 = vmatprep.subr.mxu0 0.0
          %1131 = vmatpush1.msra.mxu0 0.0
          %1132 = vmatprep.subr.mxu0 0.0
          %1133 = vmatpush1.msra.mxu0 0.0
          %1134 = vmatprep.subr.mxu0 0.0
          %1135 = vmatpush1.msra.mxu0 0.0
          %1136 = vmatprep.subr.mxu0 0.0
          %1137 = vmatpush1.msra.mxu0 0.0
          %1138 = vmatprep.subr.mxu0 0.0
          %1139 = vmatpush1.msra.mxu0 0.0
          %1140 = vmatprep.subr.mxu0 0.0
          %1141 = vmatpush1.msra.mxu0 0.0
          %1142 = vmatprep.subr.mxu0 0.0
          %1143 = vmatpush1.msra.mxu0 0.0
          %1144 = vmatprep.subr.mxu0 0.0
          %1145 = vmatpush1.msra.mxu0 0.0
          %1146 = vmatprep.subr.mxu0 0.0
          %1147 = vmatpush1.msra.mxu0 0.0
          %1148 = vmatprep.subr.mxu0 0.0
          %1149 = vmatpush1.msra.mxu0 0.0
          %1150 = vmatprep.subr.mxu0 0.0
          %1151 = vmatpush1.msra.mxu0 0.0
          %1152 = vmatprep.subr.mxu0 0.0
          %1153 = vmatpush1.msra.mxu0 0.0
          %1154 = vmatprep.subr.mxu0 0.0
          %1155 = vmatpush1.msra.mxu0 0.0
          %1156 = vmatprep.subr.mxu0 0.0
          %1157 = vmatpush1.msra.mxu0 0.0
          %1158 = vmatprep.subr.mxu0 0.0
          %1159 = vmatpush1.msra.mxu0 0.0
          %1160 = vmatprep.subr.mxu0 0.0
          %1161 = vmatpush1.msra.mxu0 0.0
          %1162 = vmatprep.subr.mxu0 0.0
          %1163 = vmatpush1.msra.mxu0 0.0
          %1164 = vmatprep.subr.mxu0 0.0
          %1165 = vmatpush1.msra.mxu0 0.0
          %1166 = vmatprep.subr.mxu0 0.0
          %1167 = vmatpush1.msra.mxu0 0.0
          %1168 = vmatprep.subr.mxu0 0.0
          %1169 = vmatpush1.msra.mxu0 0.0
          %1170 = vmatprep.subr.mxu0 0.0
          %1171 = vmatpush1.msra.mxu0 0.0
          %1172 = vmatprep.subr.mxu0 0.0
          %1173 = vmatpush1.msra.mxu0 0.0
          %1174 = vmatprep.mubr.f32.mxu0 0.0
          %1175 = vmatmul.mubr.f32.gmra.mrb[0].mxu0 %v1105
          %v1176 = vpop.f32.mrb[0].mxu0
          %v1177 = vadd.f32 %v1102, %v1176
          %v1178 = vpop.f32.mrb[0].mxu0
          %1179 = vmatprep.mubr.f32.mxu0 0.0
          %1180 = vmatmul.mubr.f32.gmra.mrb[0].mxu0 %v1108
          %v1181 = vpop.f32.mrb[0].mxu0
          %v1182 = vadd.f32 %v1103, %v1181
          %v1183 = vpop.f32.mrb[0].mxu0
          %1184 = vdwg.mxu0
          %vm1185 = vcmask 7168
          %1186 = vst.msk [vmem:[%s562] sm:$0xff] %vm1185, %v850
          %1187 = vst.msk [vmem:[%s562 + $0x8] sm:$0xff] %vm1185, %v851
          %1188 = vst.msk [vmem:[%s562 + $0x10] sm:$0xff] %vm1185, %v852
          %1189 = vst.msk [vmem:[%s562 + $0x18] sm:$0xff] %vm1185, %v853
          %1190 = vst.msk [vmem:[%s562 + $0x20] sm:$0xff] %vm1185, %v854
          %1191 = vst.msk [vmem:[%s562 + $0x28] sm:$0xff] %vm1185, %v855
          %1192 = vst.msk [vmem:[%s562 + $0x30] sm:$0xff] %vm1185, %v856
          %1193 = vst.msk [vmem:[%s562 + $0x38] sm:$0xff] %vm1185, %v857
          %1194 = vst.msk [vmem:[%s557] sm:$0xff] %vm1185, %v936
          %1195 = vst.msk [vmem:[%s557 + $0x8] sm:$0xff] %vm1185, %v941
          %1196 = vst.msk [vmem:[%s572] sm:$0xff] %vm1185, %v1092
          %1197 = vst.msk [vmem:[%s572 + $0x8] sm:$0xff] %vm1185, %v1093
          %1198 = vst.msk [vmem:[%s572 + $0x10] sm:$0xff] %vm1185, %v1094
          %1199 = vst.msk [vmem:[%s572 + $0x18] sm:$0xff] %vm1185, %v1095
          %1200 = vst.msk [vmem:[%s572 + $0x20] sm:$0xff] %vm1185, %v1096
          %1201 = vst.msk [vmem:[%s572 + $0x28] sm:$0xff] %vm1185, %v1097
          %1202 = vst.msk [vmem:[%s572 + $0x30] sm:$0xff] %vm1185, %v1098
          %1203 = vst.msk [vmem:[%s572 + $0x38] sm:$0xff] %vm1185, %v1099
          %1204 = vst.msk [vmem:[%s567] sm:$0xff] %vm1185, %v1177
          %1205 = vst.msk [vmem:[%s567 + $0x8] sm:$0xff] %vm1185, %v1182
        $region72: #{tpu_custom_call.1} parent=63 // pred_fallthru
          _
        %s1206 = sand.u32 %s290, 1
        %s1207 = scalar_lea.sflag [#allocation5], %s1206
        %s1208 = sand.u32 %s290, 1
        %s1209 = smul.addr %s1208, 8
        %s1210 = scalar_lea.vmem [#allocation4], %s1209
        %p1211 = scmp.lt.s32.totalorder %s34, 1
        %s1212 = scalar_select %p1211, %s34, 1
        %s1213 = smul.addr %s1212, 2
        %s1214 = smul.addr %s1213, 8
        %s1215 = scalar_lea.vmem %s12, %s1214
        %p1216 = scmp.lt.s32.totalorder %s34, 1
        %s1217 = scalar_select %p1216, %s34, 1
        %s1218 = smul.addr %s1217, 8
        %s1219 = smul.addr %s1218, 8
        %s1220 = scalar_lea.vmem %s13, %s1219
        %p1221 = scmp.lt.s32.totalorder %s34, 1
        %s1222 = scalar_select %p1221, %s34, 1
        %s1223 = smul.addr %s1222, 2
        %s1224 = smul.addr %s1223, 8
        %s1225 = scalar_lea.vmem %s14, %s1224
        %p1226 = scmp.lt.s32.totalorder %s34, 1
        %s1227 = scalar_select %p1226, %s34, 1
        %s1228 = smul.addr %s1227, 8
        %s1229 = smul.addr %s1228, 8
        %s1230 = scalar_lea.vmem %s15, %s1229
        // Predicated region
        $region73: #{tpu_custom_call.1} parent=63 // pred_check
          %p1231 = pneg %p300
        $region74: #{tpu_custom_call.1} parent=63 // pred_check_branch
          %1233 = sbr.rel (%p1231) target = $region76
        $region75: #{tpu_custom_call.1} parent=63 // pred_region
          %s1234 = smul.u32 2, %s35
          %s1236 = ssub.s32 128, 128
          %1237 = vsyncadd %s1207, %s1236
          %s1238 = smul.addr %s34, 2
          %s1239 = sadd.s32 %s1234, %s1238
          %s1240 = smul.addr %s1239, 64
          %s1241 = scalar_lea.hbm %s11, %s1240
          %s1243 = sshll.u32 %s1210, 4
          %s1244 = int_to_ptr.vmem [resolvable:$true] %s1243
          %1246 = dma.vmem_to_hbm [thread:$0]  %s1244, 128, %s1241, %s1207
        $region76: #{tpu_custom_call.1} parent=63 // pred_fallthru
          _
        // Predicated region
        $region77: #{tpu_custom_call.1} parent=63 // pred_check
          %p1247 = pneg %p326
        $region78: #{tpu_custom_call.1} parent=63 // pred_check_branch
          %1249 = sbr.rel (%p1247) target = $region80
        $region79: #{tpu_custom_call.1} parent=63 // pred_region
          _
        $region80: #{tpu_custom_call.1} parent=63 // pred_fallthru
          _
        // Predicated region
        $region81: #{tpu_custom_call.1} parent=63 // pred_check
          %p1250 = pneg %p352
        $region82: #{tpu_custom_call.1} parent=63 // pred_check_branch
          %1252 = sbr.rel (%p1250) target = $region84
        $region83: #{tpu_custom_call.1} parent=63 // pred_region
          _
        $region84: #{tpu_custom_call.1} parent=63 // pred_fallthru
          _
        // Predicated region
        $region85: #{tpu_custom_call.1} parent=63 // pred_check
          %p1253 = pneg %p378
        $region86: #{tpu_custom_call.1} parent=63 // pred_check_branch
          %1255 = sbr.rel (%p1253) target = $region88
        $region87: #{tpu_custom_call.1} parent=63 // pred_region
          _
        $region88: #{tpu_custom_call.1} parent=63 // pred_fallthru
          _
        // Predicated region
        $region89: #{tpu_custom_call.1} parent=63 // pred_check
          %p1256 = pneg %p404
        $region90: #{tpu_custom_call.1} parent=63 // pred_check_branch
          %1258 = sbr.rel (%p1256) target = $region92
        $region91: #{tpu_custom_call.1} parent=63 // pred_region
          _
        $region92: #{tpu_custom_call.1} parent=63 // pred_fallthru
          _
      $region64: #{tpu_custom_call.1} parent=5 // pred_fallthru
        _
      %p1259 = scmp.le.s32.totalorder 2, %s25
      // Predicated region
      $region93: #{tpu_custom_call.1} parent=5 // pred_check
        %p1260 = pneg %p1259
      $region94: #{tpu_custom_call.1} parent=5 // pred_check_branch
        %1262 = sbr.rel (%p1260) target = $region96
      $region95: #{tpu_custom_call.1} parent=5 // pred_region
        %s1263 = ssub.s32 %s25, 2
        // Predicated region
        $region97: #{tpu_custom_call.1} parent=95 // pred_check
          %p1264 = pneg %p306
        $region98: #{tpu_custom_call.1} parent=95 // pred_check_branch
          %1266 = sbr.rel (%p1264) target = $region100
        $region99: #{tpu_custom_call.1} parent=95 // pred_region
          %s1267 = sand.u32 %s291, 1
          %s1268 = scalar_lea.sflag [#allocation5], %s1267
          %s1269 = sand.u32 %s291, 1
          %s1270 = smul.addr %s1269, 8
          %s1271 = scalar_lea.vmem [#allocation4], %s1270
          %1272 = dma.done %s1268, 128
        $region100: #{tpu_custom_call.1} parent=95 // pred_fallthru
          _
        // Predicated region
        $region101: #{tpu_custom_call.1} parent=95 // pred_check
          %p1273 = pneg %p332
        $region102: #{tpu_custom_call.1} parent=95 // pred_check_branch
          %1275 = sbr.rel (%p1273) target = $region104
        $region103: #{tpu_custom_call.1} parent=95 // pred_region
          %p1276 = scmp.lt.s32.totalorder %s36, 1
          %s1277 = scalar_select %p1276, %s36, 1
          %s1278 = smul.addr %s1277, 2
          %s1279 = smul.addr %s1278, 8
          %s1280 = scalar_lea.vmem %s12, %s1279
        $region104: #{tpu_custom_call.1} parent=95 // pred_fallthru
          _
        // Predicated region
        $region105: #{tpu_custom_call.1} parent=95 // pred_check
          %p1281 = pneg %p358
        $region106: #{tpu_custom_call.1} parent=95 // pred_check_branch
          %1283 = sbr.rel (%p1281) target = $region108
        $region107: #{tpu_custom_call.1} parent=95 // pred_region
          %p1284 = scmp.lt.s32.totalorder %s36, 1
          %s1285 = scalar_select %p1284, %s36, 1
          %s1286 = smul.addr %s1285, 8
          %s1287 = smul.addr %s1286, 8
          %s1288 = scalar_lea.vmem %s13, %s1287
        $region108: #{tpu_custom_call.1} parent=95 // pred_fallthru
          _
        // Predicated region
        $region109: #{tpu_custom_call.1} parent=95 // pred_check
          %p1289 = pneg %p384
        $region110: #{tpu_custom_call.1} parent=95 // pred_check_branch
          %1291 = sbr.rel (%p1289) target = $region112
        $region111: #{tpu_custom_call.1} parent=95 // pred_region
          %p1292 = scmp.lt.s32.totalorder %s36, 1
          %s1293 = scalar_select %p1292, %s36, 1
          %s1294 = smul.addr %s1293, 2
          %s1295 = smul.addr %s1294, 8
          %s1296 = scalar_lea.vmem %s14, %s1295
        $region112: #{tpu_custom_call.1} parent=95 // pred_fallthru
          _
        // Predicated region
        $region113: #{tpu_custom_call.1} parent=95 // pred_check
          %p1297 = pneg %p410
        $region114: #{tpu_custom_call.1} parent=95 // pred_check_branch
          %1299 = sbr.rel (%p1297) target = $region116
        $region115: #{tpu_custom_call.1} parent=95 // pred_region
          %p1300 = scmp.lt.s32.totalorder %s36, 1
          %s1301 = scalar_select %p1300, %s36, 1
          %s1302 = smul.addr %s1301, 8
          %s1303 = smul.addr %s1302, 8
          %s1304 = scalar_lea.vmem %s15, %s1303
        $region116: #{tpu_custom_call.1} parent=95 // pred_fallthru
          _
      $region96: #{tpu_custom_call.1} parent=5 // pred_fallthru
        _
    $region6: #{tpu_custom_call.1} parent=1 // loop_footer
      %s29 = sadd.s32 1, %s25
    $region7: #{tpu_custom_call.1} parent=1 // loop_footer_branch
      %24 = sbr.rel target = $region3
    $region8: #{tpu_custom_call.1} parent=1 // loop_exit
      _
    %1305 = vsyncpa [#allocation5], 1
    %s1306 = scalar_lea.sflag [#allocation5], 1
    %1307 = vsyncpa %s1306, 1

</llo_original>
